<compile_context>
chip_gen: v7x
topology: tpu7x:2x2x1
jax: 0.10.0
libtpu: 0.0.40
codegen_flags: <defaults>
</compile_context>

<pallas_src>
import jax
import jax.numpy as jnp
from jax import lax
from jax.experimental import pallas as pl
from jax.experimental.pallas import tpu as pltpu


NODE_NUM = 64          # stands in for args.node_num
DROPOUT = 0.5          # stands in for args.dropout (identity in eval mode)
BN_EPS = 1e-5
LAYER_DIMS = [5, NODE_NUM, 200, 150, 30, 1]


def _mlp_kernel(x_ref,
                w1, t1, w2, t2, w3, t3, w4, t4,
                w5, b5,
                o_ref):
    """Fused forward: 4x (Linear with folded BN -> ReLU) + final Linear.

    Activation layout is (features, tb): batch on lanes (tb is a multiple of
    128), features on sublanes.  All matmul accumulation and the affine/ReLU
    epilogue are float32; operands/activations use the weights' dtype (bf16
    by default).  Dropout == identity (eval mode).
    """
    # Layer 1 as an NT contraction: (node_num, 5) x (tb, 5)^T -> (node_num, tb).
    h = lax.dot_general(
        w1[...], x_ref[...].astype(w1.dtype),
        dimension_numbers=(((1,), (1,)), ((), ())),
        preferred_element_type=jnp.float32)
    h = jnp.maximum(h + t1[...], 0.0).astype(w2.dtype)

    def layer(h, w_ref, t_ref, next_dtype):
        z = jnp.dot(w_ref[...], h, preferred_element_type=jnp.float32)
        # Folded BN affine + bias is a single column add; ReLU; cast once so the
        # live intermediate is carried in the (bf16) compute dtype.
        return jnp.maximum(z + t_ref[...], 0.0).astype(next_dtype)

    h = layer(h, w2, t2, w3.dtype)
    h = layer(h, w3, t3, w4.dtype)
    h = layer(h, w4, t4, w5.dtype)

    # Final 30 -> 1 layer: (1, 30) @ (30, tb) -> lane-dense (1, tb).
    out = jnp.dot(w5[...], h, preferred_element_type=jnp.float32) + b5[...]
    o_ref[...] = out.reshape(o_ref.shape).astype(o_ref.dtype)


def _round_up(a, b):
    return -(-a // b) * b


def mlp_forward(x, params, *, tb=4096):
    """x: (..., 5) -> (N, 1), N = prod(leading dims).  Mirrors x.view(-1, 5).

    `params` is the flat folded list from fold_params().  tb is the batch tile
    (lane axis of every activation); sweep 2048-8192 on v6e, keep ~4096 on v7x
    unless vmem_limit_bytes is raised.
    """
    x2 = x.reshape(-1, LAYER_DIMS[0])
    n = x2.shape[0]
    if n == 0:
        return jnp.zeros((0, 1), jnp.float32)

    compute_dtype = params[0].dtype
    if x2.dtype != compute_dtype:
        x2 = x2.astype(compute_dtype)          # halves the input HBM stream (bf16)

    # Batch lives on the lane axis, so the tile must be 128-aligned.
    n128 = _round_up(n, 128)
    tb = _round_up(int(max(128, min(tb, n128))), 128)
    # Prefer >= 2 grid steps when the batch allows it so ("parallel",) can
    # shard the grid across both v7x TensorCores; costs one ~0.35us step
    # elsewhere, which is negligible.
    if n128 // tb < 2 and n128 >= 256:
        tb = _round_up(-(-n128 // 2), 128)

    n_pad = _round_up(n, tb)
    if n_pad != n:
        x2 = jnp.pad(x2, ((0, n_pad - n), (0, 0)))
    num_tiles = n_pad // tb

    # Parameters are small and have constant block indices: fetched once,
    # kept resident across grid steps.  (Optional micro-opt: pl.Buffered(1)
    # on these specs to drop their second buffer.)
    param_specs = [pl.BlockSpec(p.shape, lambda i: (0, 0)) for p in params]

    out = pl.pallas_call(
        _mlp_kernel,
        out_shape=jax.ShapeDtypeStruct((num_tiles, 1, tb), jnp.float32),
        grid_spec=pltpu.PrefetchScalarGridSpec(
            num_scalar_prefetch=0,
            grid=(num_tiles,),
            in_specs=[pl.BlockSpec((tb, LAYER_DIMS[0]), lambda i: (i, 0))]
                     + param_specs,
            out_specs=pl.BlockSpec((1, 1, tb), lambda i: (i, 0, 0)),
        ),
        compiler_params=pltpu.CompilerParams(
            dimension_semantics=("parallel",)),
    )(x2, *params)

    # Lane-dense (tiles, 1, tb) slab -> contiguous (n, 1) column (free reshape).
    # Padded rows carry garbage-but-finite values and are sliced off here.
    return out.reshape(n_pad, 1)[:n]


def init_raw_params(key):
    """Deterministic synthetic parameters mirroring the PyTorch module state."""
    keys = iter(jax.random.split(key, 64))
    raw = []
    for li in range(5):
        fan_in, fan_out = LAYER_DIMS[li], LAYER_DIMS[li + 1]
        bound = 1.0 / jnp.sqrt(jnp.float32(fan_in))
        w = jax.random.uniform(next(keys), (fan_in, fan_out),
                               jnp.float32, -bound, bound)
        b = jax.random.uniform(next(keys), (fan_out,),
                               jnp.float32, -bound, bound)
        layer = {"w": w, "b": b}
        if li < 4:
            layer["gamma"] = 1.0 + 0.1 * jax.random.normal(next(keys), (fan_out,))
            layer["beta"] = 0.1 * jax.random.normal(next(keys), (fan_out,))
            layer["mean"] = 0.1 * jax.random.normal(next(keys), (fan_out,))
            layer["var"] = jax.random.uniform(next(keys), (fan_out,),
                                              jnp.float32, 0.5, 1.5)
        raw.append(layer)
    return raw


def fold_params(raw, matmul_dtype=jnp.bfloat16):
    """Fold eval-mode BN + Linear bias and transpose for batch-on-lanes layout.

    Returns the flat kernel arg list [w1T,t1, w2T,t2, w3T,t3, w4T,t4, w5T, b5]
    with weights as (F_out, F_in) in `matmul_dtype` (bf16 default — the MXU is
    bf16-native on v5e/v6e/v7x) and biases as float32 (F_out, 1) columns.
    Pass matmul_dtype=jnp.float32 for an exact (PyTorch-eval-equivalent) path.
    """
    flat = []
    for li, layer in enumerate(raw):
        w, b = layer["w"], layer["b"]
        if li < 4:
            scale = layer["gamma"] * jax.lax.rsqrt(layer["var"] + BN_EPS)
            shift = layer["beta"] - layer["mean"] * scale
            w_eff_t = (w * scale[None, :]).T.astype(matmul_dtype)   # (F_out, F_in)
            t_eff = (b * scale + shift).reshape(-1, 1).astype(jnp.float32)
            flat += [w_eff_t, t_eff]
        else:
            w5t = w.T.astype(matmul_dtype)               # (1, 30)
            b5 = b.reshape(1, 1).astype(jnp.float32)     # (1, 1)
            flat += [w5t, b5]
    return flat


def mlp_reference(x, raw):
    """Pure-JAX f32 reference of the same eval-mode forward pass (un-folded)."""
    h = x.reshape(-1, LAYER_DIMS[0]).astype(jnp.float32)
    for li, layer in enumerate(raw):
        h = h @ layer["w"] + layer["b"][None, :]
        if li < 4:
            scale = layer["gamma"] * jax.lax.rsqrt(layer["var"] + BN_EPS)
            h = (h - layer["mean"][None, :]) * scale[None, :] + layer["beta"][None, :]
            h = jnp.maximum(h, 0.0)
    return h


if __name__ == "__main__":
    key = jax.random.PRNGKey(0)
    k_param, k_x = jax.random.split(key)

    raw = init_raw_params(k_param)
    # Input mirrors an arbitrary leading shape; forward does x.view(-1, 5).
    x = jax.random.normal(k_x, (2, 128, 5), jnp.float32)   # -> 256 rows

    ref = mlp_reference(x, raw)

    # Exact f32-matmul path — tight check against the un-folded reference.
    out_f32 = jax.block_until_ready(
        mlp_forward(x, fold_params(raw, jnp.float32)))
    assert out_f32.shape == (256, 1), out_f32.shape
    assert jnp.allclose(out_f32, ref, atol=1e-4, rtol=1e-4), \
        float(jnp.max(jnp.abs(out_f32 - ref)))

    # Default bf16 path (recommended on v5e/v6e/v7x): bf16 operands/activations,
    # f32 accumulation + epilogue -> ~1% relative error vs. the f32 reference.
    out_bf16 = jax.block_until_ready(mlp_forward(x, fold_params(raw)))
    assert out_bf16.shape == (256, 1), out_bf16.shape
    assert jnp.allclose(out_bf16, ref, atol=1e-1, rtol=5e-2), \
        float(jnp.max(jnp.abs(out_bf16 - ref)))

    print("KERNEL_OK")
</pallas_src>

<mosaic_0001>
module attributes {stable_mosaic.version = 11 : i64} {
  func.func @_mlp_kernel(%arg0: i32, %arg1: memref<128x5xf32, #tpu.memory_space<vmem>>, %arg2: memref<64x5xf32, #tpu.memory_space<vmem>>, %arg3: memref<64x1xf32, #tpu.memory_space<vmem>>, %arg4: memref<200x64xf32, #tpu.memory_space<vmem>>, %arg5: memref<200x1xf32, #tpu.memory_space<vmem>>, %arg6: memref<150x200xf32, #tpu.memory_space<vmem>>, %arg7: memref<150x1xf32, #tpu.memory_space<vmem>>, %arg8: memref<30x150xf32, #tpu.memory_space<vmem>>, %arg9: memref<30x1xf32, #tpu.memory_space<vmem>>, %arg10: memref<1x30xf32, #tpu.memory_space<vmem>>, %arg11: memref<1x1xf32, #tpu.memory_space<vmem>>, %arg12: memref<1x1x128xf32, #tpu.memory_space<vmem>>) attributes {dimension_semantics = [#tpu.dimension_semantics<parallel>], iteration_bounds = array<i64: 2>, scalar_prefetch = 0 : i64, scratch_operands = 0 : i64, tpu.core_type = #tpu.core_type<tc>, window_params = [{transform_indices = @transform_0, window_bounds = array<i64: 128, 5>}, {pipeline_mode = #tpu.pipeline_mode<synchronous>, transform_indices = @transform_1, window_bounds = array<i64: 64, 5>}, {pipeline_mode = #tpu.pipeline_mode<synchronous>, transform_indices = @transform_2, window_bounds = array<i64: 64, 1>}, {pipeline_mode = #tpu.pipeline_mode<synchronous>, transform_indices = @transform_3, window_bounds = array<i64: 200, 64>}, {pipeline_mode = #tpu.pipeline_mode<synchronous>, transform_indices = @transform_4, window_bounds = array<i64: 200, 1>}, {pipeline_mode = #tpu.pipeline_mode<synchronous>, transform_indices = @transform_5, window_bounds = array<i64: 150, 200>}, {pipeline_mode = #tpu.pipeline_mode<synchronous>, transform_indices = @transform_6, window_bounds = array<i64: 150, 1>}, {pipeline_mode = #tpu.pipeline_mode<synchronous>, transform_indices = @transform_7, window_bounds = array<i64: 30, 150>}, {pipeline_mode = #tpu.pipeline_mode<synchronous>, transform_indices = @transform_8, window_bounds = array<i64: 30, 1>}, {pipeline_mode = #tpu.pipeline_mode<synchronous>, transform_indices = @transform_9, window_bounds = array<i64: 1, 30>}, {pipeline_mode = #tpu.pipeline_mode<synchronous>, transform_indices = @transform_10, window_bounds = array<i64: 1, 1>}, {transform_indices = @transform_11, window_bounds = array<i64: 1, 1, 128>}]} {
    %c0 = arith.constant 0 : index
    %c0_0 = arith.constant 0 : index
    %0 = vector.load %arg2[%c0, %c0_0] : memref<64x5xf32, #tpu.memory_space<vmem>>, vector<64x5xf32>
    %c0_1 = arith.constant 0 : index
    %c0_2 = arith.constant 0 : index
    %1 = vector.load %arg1[%c0_1, %c0_2] : memref<128x5xf32, #tpu.memory_space<vmem>>, vector<128x5xf32>
    %cst = arith.constant dense<0.000000e+00> : vector<64x128xf32>
    %2 = tpu.matmul %0, %1, %cst {dimension_numbers = #tpu.dot_dimension_numbers<[1], [1], [0], [0], [0, 0, 1, 0], [], []>} : vector<64x5xf32>, vector<128x5xf32>, vector<64x128xf32> -> vector<64x128xf32>
    %c0_3 = arith.constant 0 : index
    %c0_4 = arith.constant 0 : index
    %3 = vector.load %arg3[%c0_3, %c0_4] : memref<64x1xf32, #tpu.memory_space<vmem>>, vector<64x1xf32>
    %4 = vector.broadcast %3 : vector<64x1xf32> to vector<64x128xf32>
    %5 = arith.addf %2, %4 : vector<64x128xf32>
    %cst_5 = arith.constant 0.000000e+00 : f32
    %6 = vector.broadcast %cst_5 : f32 to vector<64x128xf32>
    %7 = arith.maximumf %5, %6 : vector<64x128xf32>
    %c0_6 = arith.constant 0 : index
    %c0_7 = arith.constant 0 : index
    %8 = vector.load %arg4[%c0_6, %c0_7] : memref<200x64xf32, #tpu.memory_space<vmem>>, vector<200x64xf32>
    %cst_8 = arith.constant dense<0.000000e+00> : vector<200x128xf32>
    %9 = tpu.matmul %8, %7, %cst_8 {dimension_numbers = #tpu.dot_dimension_numbers<[1], [0], [0], [1], [0, 0, 1, 1], [], []>} : vector<200x64xf32>, vector<64x128xf32>, vector<200x128xf32> -> vector<200x128xf32>
    %c0_9 = arith.constant 0 : index
    %c0_10 = arith.constant 0 : index
    %10 = vector.load %arg5[%c0_9, %c0_10] : memref<200x1xf32, #tpu.memory_space<vmem>>, vector<200x1xf32>
    %11 = vector.broadcast %10 : vector<200x1xf32> to vector<200x128xf32>
    %12 = arith.addf %9, %11 : vector<200x128xf32>
    %cst_11 = arith.constant 0.000000e+00 : f32
    %13 = vector.broadcast %cst_11 : f32 to vector<200x128xf32>
    %14 = arith.maximumf %12, %13 : vector<200x128xf32>
    %c0_12 = arith.constant 0 : index
    %c0_13 = arith.constant 0 : index
    %15 = vector.load %arg6[%c0_12, %c0_13] : memref<150x200xf32, #tpu.memory_space<vmem>>, vector<150x200xf32>
    %cst_14 = arith.constant dense<0.000000e+00> : vector<150x128xf32>
    %16 = tpu.matmul %15, %14, %cst_14 {dimension_numbers = #tpu.dot_dimension_numbers<[1], [0], [0], [1], [0, 0, 1, 1], [], []>} : vector<150x200xf32>, vector<200x128xf32>, vector<150x128xf32> -> vector<150x128xf32>
    %c0_15 = arith.constant 0 : index
    %c0_16 = arith.constant 0 : index
    %17 = vector.load %arg7[%c0_15, %c0_16] : memref<150x1xf32, #tpu.memory_space<vmem>>, vector<150x1xf32>
    %18 = vector.broadcast %17 : vector<150x1xf32> to vector<150x128xf32>
    %19 = arith.addf %16, %18 : vector<150x128xf32>
    %cst_17 = arith.constant 0.000000e+00 : f32
    %20 = vector.broadcast %cst_17 : f32 to vector<150x128xf32>
    %21 = arith.maximumf %19, %20 : vector<150x128xf32>
    %c0_18 = arith.constant 0 : index
    %c0_19 = arith.constant 0 : index
    %22 = vector.load %arg8[%c0_18, %c0_19] : memref<30x150xf32, #tpu.memory_space<vmem>>, vector<30x150xf32>
    %cst_20 = arith.constant dense<0.000000e+00> : vector<30x128xf32>
    %23 = tpu.matmul %22, %21, %cst_20 {dimension_numbers = #tpu.dot_dimension_numbers<[1], [0], [0], [1], [0, 0, 1, 1], [], []>} : vector<30x150xf32>, vector<150x128xf32>, vector<30x128xf32> -> vector<30x128xf32>
    %c0_21 = arith.constant 0 : index
    %c0_22 = arith.constant 0 : index
    %24 = vector.load %arg9[%c0_21, %c0_22] : memref<30x1xf32, #tpu.memory_space<vmem>>, vector<30x1xf32>
    %25 = vector.broadcast %24 : vector<30x1xf32> to vector<30x128xf32>
    %26 = arith.addf %23, %25 : vector<30x128xf32>
    %cst_23 = arith.constant 0.000000e+00 : f32
    %27 = vector.broadcast %cst_23 : f32 to vector<30x128xf32>
    %28 = arith.maximumf %26, %27 : vector<30x128xf32>
    %c0_24 = arith.constant 0 : index
    %c0_25 = arith.constant 0 : index
    %29 = vector.load %arg10[%c0_24, %c0_25] : memref<1x30xf32, #tpu.memory_space<vmem>>, vector<1x30xf32>
    %cst_26 = arith.constant dense<0.000000e+00> : vector<1x128xf32>
    %30 = tpu.matmul %29, %28, %cst_26 {dimension_numbers = #tpu.dot_dimension_numbers<[1], [0], [0], [1], [0, 0, 1, 1], [], []>} : vector<1x30xf32>, vector<30x128xf32>, vector<1x128xf32> -> vector<1x128xf32>
    %c0_27 = arith.constant 0 : index
    %c0_28 = arith.constant 0 : index
    %31 = vector.load %arg11[%c0_27, %c0_28] : memref<1x1xf32, #tpu.memory_space<vmem>>, vector<1x1xf32>
    %32 = vector.broadcast %31 : vector<1x1xf32> to vector<1x128xf32>
    %33 = arith.addf %30, %32 : vector<1x128xf32>
    %34 = vector.shape_cast %33 : vector<1x128xf32> to vector<1x1x128xf32>
    %c0_29 = arith.constant 0 : index
    %c0_30 = arith.constant 0 : index
    %c0_31 = arith.constant 0 : index
    %35 = vector.load %arg12[%c0_29, %c0_30, %c0_31] : memref<1x1x128xf32, #tpu.memory_space<vmem>>, vector<1x1x128xf32>
    tpu.vector_store %arg12[%c0_29, %c0_30, %c0_31], %34 {strides = array<i32>} : memref<1x1x128xf32, #tpu.memory_space<vmem>>, vector<1x1x128xf32>,
    return
  }
  func.func @transform_0(%arg0: i32) -> (i32, i32) {
    %c0_i32 = arith.constant 0 : i32
    %c0_i32_0 = arith.constant 0 : i32
    return %arg0, %c0_i32 : i32, i32
  }
  func.func @transform_1(%arg0: i32) -> (i32, i32) {
    %c0_i32 = arith.constant 0 : i32
    %c0_i32_0 = arith.constant 0 : i32
    %c0_i32_1 = arith.constant 0 : i32
    return %c0_i32, %c0_i32_0 : i32, i32
  }
  func.func @transform_2(%arg0: i32) -> (i32, i32) {
    %c0_i32 = arith.constant 0 : i32
    %c0_i32_0 = arith.constant 0 : i32
    %c0_i32_1 = arith.constant 0 : i32
    return %c0_i32, %c0_i32_0 : i32, i32
  }
  func.func @transform_3(%arg0: i32) -> (i32, i32) {
    %c0_i32 = arith.constant 0 : i32
    %c0_i32_0 = arith.constant 0 : i32
    %c0_i32_1 = arith.constant 0 : i32
    return %c0_i32, %c0_i32_0 : i32, i32
  }
  func.func @transform_4(%arg0: i32) -> (i32, i32) {
    %c0_i32 = arith.constant 0 : i32
    %c0_i32_0 = arith.constant 0 : i32
    %c0_i32_1 = arith.constant 0 : i32
    return %c0_i32, %c0_i32_0 : i32, i32
  }
  func.func @transform_5(%arg0: i32) -> (i32, i32) {
    %c0_i32 = arith.constant 0 : i32
    %c0_i32_0 = arith.constant 0 : i32
    %c0_i32_1 = arith.constant 0 : i32
    return %c0_i32, %c0_i32_0 : i32, i32
  }
  func.func @transform_6(%arg0: i32) -> (i32, i32) {
    %c0_i32 = arith.constant 0 : i32
    %c0_i32_0 = arith.constant 0 : i32
    %c0_i32_1 = arith.constant 0 : i32
    return %c0_i32, %c0_i32_0 : i32, i32
  }
  func.func @transform_7(%arg0: i32) -> (i32, i32) {
    %c0_i32 = arith.constant 0 : i32
    %c0_i32_0 = arith.constant 0 : i32
    %c0_i32_1 = arith.constant 0 : i32
    return %c0_i32, %c0_i32_0 : i32, i32
  }
  func.func @transform_8(%arg0: i32) -> (i32, i32) {
    %c0_i32 = arith.constant 0 : i32
    %c0_i32_0 = arith.constant 0 : i32
    %c0_i32_1 = arith.constant 0 : i32
    return %c0_i32, %c0_i32_0 : i32, i32
  }
  func.func @transform_9(%arg0: i32) -> (i32, i32) {
    %c0_i32 = arith.constant 0 : i32
    %c0_i32_0 = arith.constant 0 : i32
    %c0_i32_1 = arith.constant 0 : i32
    return %c0_i32, %c0_i32_0 : i32, i32
  }
  func.func @transform_10(%arg0: i32) -> (i32, i32) {
    %c0_i32 = arith.constant 0 : i32
    %c0_i32_0 = arith.constant 0 : i32
    %c0_i32_1 = arith.constant 0 : i32
    return %c0_i32, %c0_i32_0 : i32, i32
  }
  func.func @transform_11(%arg0: i32) -> (i32, i32, i32) {
    %c0_i32 = arith.constant 0 : i32
    %c0_i32_0 = arith.constant 0 : i32
    %c0_i32_1 = arith.constant 0 : i32
    return %arg0, %c0_i32, %c0_i32_0 : i32, i32, i32
  }
}

</mosaic_0001>

<llo_original>
// kernel: tpu_custom_call.1
$region0: #{tpu_custom_call.1}
  #allocation0 [shape = 'u32[]', space=smem, size = 0x4, offset = 0x4, fixed_abs, tag = 'smem constant byte address 0x4 - core index']
  #allocation1 [shape = 'u32[144,128]{1,0:T(1,128)}', space=vmem, size = 0x12000, scoped, tag = 'internal scratch']
  #allocation2 [shape = 'f32[1,1]{1,0:T(1,128)S(1)}', space=vmem, size = 0x200, scoped, tag = 'scoped memory for tpu_custom_call.1']
  %s0 = inlined_call_operand.vmem [shape: f32[256,5], index: 0, kind: input, shape index: {}]
  %s1 = inlined_call_operand.vmem [shape: f32[64,5], index: 1, kind: input, shape index: {}]
  %s2 = inlined_call_operand.vmem [shape: f32[64,1], index: 2, kind: input, shape index: {}]
  %s3 = inlined_call_operand.vmem [shape: f32[200,64], index: 3, kind: input, shape index: {}]
  %s4 = inlined_call_operand.vmem [shape: f32[200,1], index: 4, kind: input, shape index: {}]
  %s5 = inlined_call_operand.vmem [shape: f32[150,200], index: 5, kind: input, shape index: {}]
  %s6 = inlined_call_operand.vmem [shape: f32[150,1], index: 6, kind: input, shape index: {}]
  %s7 = inlined_call_operand.vmem [shape: f32[30,150], index: 7, kind: input, shape index: {}]
  %s8 = inlined_call_operand.vmem [shape: f32[30,1], index: 8, kind: input, shape index: {}]
  %s9 = inlined_call_operand.vmem [shape: f32[1,30], index: 9, kind: input, shape index: {}]
  %s10 = inlined_call_operand.<no memory space> [shape: f32[1,1], index: 10, kind: input, shape index: {}]
  %s11 = inlined_call_operand.hbm [shape: f32[2,1,128], index: 11, kind: output, shape index: {}]
  %s12 = sld [smem:[#allocation0]]
  $region77: #{tpu_custom_call.1} parent=0
    _
  %s14 = ssub.s32 1, %s12
  %s15 = scalar_select 0, %s14, %s12
  %v16 = vstv %s10
  %17 = vst [vmem:[#allocation2] sm:$0x1] %v16
  $region1: #{tpu_custom_call.1} parent=0
    #allocation3 [shape = 'u8[1024]{0}', space=vmem, size = 0x400, scoped, tag = 'output window, operand 0']
    #allocation4 [shape = 's32[2]{0}', space=sflag, size = 0x8, scoped, tag = 'scoped memory for tpu_custom_call.1']
    %18 = vsyncpa [#allocation4], 0
    %s19 = scalar_lea.sflag [#allocation4], 1
    %20 = vsyncpa %s19, 0
    loop: start=0, step=1, limit=4
    $region2: #{tpu_custom_call.1} parent=1 // loop_pre_header
      _
    $region3: #{tpu_custom_call.1} parent=1 // loop_header
      %s22 = sphi 0, %s26
      %p23 = scmp.ge.s32.totalorder %s22, 4
      %s32 = sphi 0, %s34
      %s35 = sphi 0, %s32
      %s36 = sphi 0, %s35
      %s52 = sphi 0, %s36
      %s56 = sphi 0, %s56
      %s58 = sphi 0, %s56
      %s59 = sphi 0, %s58
      %s73 = sphi 0, %s59
      %s77 = sphi 0, %s77
      %s79 = sphi 0, %s77
      %s80 = sphi 0, %s79
      %s94 = sphi 0, %s80
      %s98 = sphi 0, %s98
      %s100 = sphi 0, %s98
      %s101 = sphi 0, %s100
      %s115 = sphi 0, %s101
      %s119 = sphi 0, %s119
      %s121 = sphi 0, %s119
      %s122 = sphi 0, %s121
      %s136 = sphi 0, %s122
      %s140 = sphi 0, %s140
      %s142 = sphi 0, %s140
      %s143 = sphi 0, %s142
      %s157 = sphi 0, %s143
      %s161 = sphi 0, %s161
      %s163 = sphi 0, %s161
      %s164 = sphi 0, %s163
      %s178 = sphi 0, %s164
      %s182 = sphi 0, %s182
      %s184 = sphi 0, %s182
      %s185 = sphi 0, %s184
      %s199 = sphi 0, %s185
      %s203 = sphi 0, %s203
      %s205 = sphi 0, %s203
      %s206 = sphi 0, %s205
      %s220 = sphi 0, %s206
      %s224 = sphi 0, %s224
      %s226 = sphi 0, %s224
      %s227 = sphi 0, %s226
      %s241 = sphi 0, %s227
      %s245 = sphi 0, %s245
      %s247 = sphi 0, %s245
      %s248 = sphi 0, %s247
      %s262 = sphi 0, %s248
      %s268 = sphi 0, %s270
      %s271 = sphi 0, %s268
      %s272 = sphi 0, %s271
      %s288 = sphi 0, %s272
    $region4: #{tpu_custom_call.1} parent=1 // loop_header_branch
      %25 = sbr.rel (%p23) target = $region8
    $region5: #{tpu_custom_call.1} parent=1 // loop_body
      %s27 = ssub.s32 %s22, 1
      %s28 = ssub.s32 %s22, 2
      %s29 = sadd.s32 %s22, 1
      %s30 = ssub.s32 %s22, %s29
      %p31 = scmp.eq.s32.totalorder %s30, 0
      %s33 = sadd.s32 %s32, 1
      %s34 = scalar_select %p31, %s32, %s33
      %p37 = pneg %p31
      %p38 = scmp.eq.s32.totalorder %s22, 1
      %p39 = por %p37, %p38
      %p40 = scmp.ne.s32.totalorder %s32, %s35
      %p41 = scmp.eq.s32.totalorder %s22, 0
      %p42 = por %p40, %p41
      %p43 = scmp.ne.s32.totalorder %s32, %s35
      %p44 = scmp.eq.s32.totalorder %s27, 1
      %p45 = por %p43, %p44
      %p46 = scmp.ne.s32.totalorder %s35, %s36
      %p47 = scmp.eq.s32.totalorder %s27, 0
      %p48 = por %p46, %p47
      %p49 = scmp.ne.s32.totalorder %s35, %s36
      %p50 = scmp.eq.s32.totalorder %s28, 1
      %p51 = por %p49, %p50
      %p53 = scmp.ne.s32.totalorder %s36, %s52
      %p54 = scmp.eq.s32.totalorder %s28, 0
      %p55 = por %p53, %p54
      %s57 = sadd.s32 %s56, 1
      %p60 = scmp.eq.s32.totalorder %s22, 1
      %p61 = scmp.ne.s32.totalorder %s56, %s58
      %p62 = scmp.eq.s32.totalorder %s22, 0
      %p63 = por %p61, %p62
      %p64 = scmp.ne.s32.totalorder %s56, %s58
      %p65 = scmp.eq.s32.totalorder %s27, 1
      %p66 = por %p64, %p65
      %p67 = scmp.ne.s32.totalorder %s58, %s59
      %p68 = scmp.eq.s32.totalorder %s27, 0
      %p69 = por %p67, %p68
      %p70 = scmp.ne.s32.totalorder %s58, %s59
      %p71 = scmp.eq.s32.totalorder %s28, 1
      %p72 = por %p70, %p71
      %p74 = scmp.ne.s32.totalorder %s59, %s73
      %p75 = scmp.eq.s32.totalorder %s28, 0
      %p76 = por %p74, %p75
      %s78 = sadd.s32 %s77, 1
      %p81 = scmp.eq.s32.totalorder %s22, 1
      %p82 = scmp.ne.s32.totalorder %s77, %s79
      %p83 = scmp.eq.s32.totalorder %s22, 0
      %p84 = por %p82, %p83
      %p85 = scmp.ne.s32.totalorder %s77, %s79
      %p86 = scmp.eq.s32.totalorder %s27, 1
      %p87 = por %p85, %p86
      %p88 = scmp.ne.s32.totalorder %s79, %s80
      %p89 = scmp.eq.s32.totalorder %s27, 0
      %p90 = por %p88, %p89
      %p91 = scmp.ne.s32.totalorder %s79, %s80
      %p92 = scmp.eq.s32.totalorder %s28, 1
      %p93 = por %p91, %p92
      %p95 = scmp.ne.s32.totalorder %s80, %s94
      %p96 = scmp.eq.s32.totalorder %s28, 0
      %p97 = por %p95, %p96
      %s99 = sadd.s32 %s98, 1
      %p102 = scmp.eq.s32.totalorder %s22, 1
      %p103 = scmp.ne.s32.totalorder %s98, %s100
      %p104 = scmp.eq.s32.totalorder %s22, 0
      %p105 = por %p103, %p104
      %p106 = scmp.ne.s32.totalorder %s98, %s100
      %p107 = scmp.eq.s32.totalorder %s27, 1
      %p108 = por %p106, %p107
      %p109 = scmp.ne.s32.totalorder %s100, %s101
      %p110 = scmp.eq.s32.totalorder %s27, 0
      %p111 = por %p109, %p110
      %p112 = scmp.ne.s32.totalorder %s100, %s101
      %p113 = scmp.eq.s32.totalorder %s28, 1
      %p114 = por %p112, %p113
      %p116 = scmp.ne.s32.totalorder %s101, %s115
      %p117 = scmp.eq.s32.totalorder %s28, 0
      %p118 = por %p116, %p117
      %s120 = sadd.s32 %s119, 1
      %p123 = scmp.eq.s32.totalorder %s22, 1
      %p124 = scmp.ne.s32.totalorder %s119, %s121
      %p125 = scmp.eq.s32.totalorder %s22, 0
      %p126 = por %p124, %p125
      %p127 = scmp.ne.s32.totalorder %s119, %s121
      %p128 = scmp.eq.s32.totalorder %s27, 1
      %p129 = por %p127, %p128
      %p130 = scmp.ne.s32.totalorder %s121, %s122
      %p131 = scmp.eq.s32.totalorder %s27, 0
      %p132 = por %p130, %p131
      %p133 = scmp.ne.s32.totalorder %s121, %s122
      %p134 = scmp.eq.s32.totalorder %s28, 1
      %p135 = por %p133, %p134
      %p137 = scmp.ne.s32.totalorder %s122, %s136
      %p138 = scmp.eq.s32.totalorder %s28, 0
      %p139 = por %p137, %p138
      %s141 = sadd.s32 %s140, 1
      %p144 = scmp.eq.s32.totalorder %s22, 1
      %p145 = scmp.ne.s32.totalorder %s140, %s142
      %p146 = scmp.eq.s32.totalorder %s22, 0
      %p147 = por %p145, %p146
      %p148 = scmp.ne.s32.totalorder %s140, %s142
      %p149 = scmp.eq.s32.totalorder %s27, 1
      %p150 = por %p148, %p149
      %p151 = scmp.ne.s32.totalorder %s142, %s143
      %p152 = scmp.eq.s32.totalorder %s27, 0
      %p153 = por %p151, %p152
      %p154 = scmp.ne.s32.totalorder %s142, %s143
      %p155 = scmp.eq.s32.totalorder %s28, 1
      %p156 = por %p154, %p155
      %p158 = scmp.ne.s32.totalorder %s143, %s157
      %p159 = scmp.eq.s32.totalorder %s28, 0
      %p160 = por %p158, %p159
      %s162 = sadd.s32 %s161, 1
      %p165 = scmp.eq.s32.totalorder %s22, 1
      %p166 = scmp.ne.s32.totalorder %s161, %s163
      %p167 = scmp.eq.s32.totalorder %s22, 0
      %p168 = por %p166, %p167
      %p169 = scmp.ne.s32.totalorder %s161, %s163
      %p170 = scmp.eq.s32.totalorder %s27, 1
      %p171 = por %p169, %p170
      %p172 = scmp.ne.s32.totalorder %s163, %s164
      %p173 = scmp.eq.s32.totalorder %s27, 0
      %p174 = por %p172, %p173
      %p175 = scmp.ne.s32.totalorder %s163, %s164
      %p176 = scmp.eq.s32.totalorder %s28, 1
      %p177 = por %p175, %p176
      %p179 = scmp.ne.s32.totalorder %s164, %s178
      %p180 = scmp.eq.s32.totalorder %s28, 0
      %p181 = por %p179, %p180
      %s183 = sadd.s32 %s182, 1
      %p186 = scmp.eq.s32.totalorder %s22, 1
      %p187 = scmp.ne.s32.totalorder %s182, %s184
      %p188 = scmp.eq.s32.totalorder %s22, 0
      %p189 = por %p187, %p188
      %p190 = scmp.ne.s32.totalorder %s182, %s184
      %p191 = scmp.eq.s32.totalorder %s27, 1
      %p192 = por %p190, %p191
      %p193 = scmp.ne.s32.totalorder %s184, %s185
      %p194 = scmp.eq.s32.totalorder %s27, 0
      %p195 = por %p193, %p194
      %p196 = scmp.ne.s32.totalorder %s184, %s185
      %p197 = scmp.eq.s32.totalorder %s28, 1
      %p198 = por %p196, %p197
      %p200 = scmp.ne.s32.totalorder %s185, %s199
      %p201 = scmp.eq.s32.totalorder %s28, 0
      %p202 = por %p200, %p201
      %s204 = sadd.s32 %s203, 1
      %p207 = scmp.eq.s32.totalorder %s22, 1
      %p208 = scmp.ne.s32.totalorder %s203, %s205
      %p209 = scmp.eq.s32.totalorder %s22, 0
      %p210 = por %p208, %p209
      %p211 = scmp.ne.s32.totalorder %s203, %s205
      %p212 = scmp.eq.s32.totalorder %s27, 1
      %p213 = por %p211, %p212
      %p214 = scmp.ne.s32.totalorder %s205, %s206
      %p215 = scmp.eq.s32.totalorder %s27, 0
      %p216 = por %p214, %p215
      %p217 = scmp.ne.s32.totalorder %s205, %s206
      %p218 = scmp.eq.s32.totalorder %s28, 1
      %p219 = por %p217, %p218
      %p221 = scmp.ne.s32.totalorder %s206, %s220
      %p222 = scmp.eq.s32.totalorder %s28, 0
      %p223 = por %p221, %p222
      %s225 = sadd.s32 %s224, 1
      %p228 = scmp.eq.s32.totalorder %s22, 1
      %p229 = scmp.ne.s32.totalorder %s224, %s226
      %p230 = scmp.eq.s32.totalorder %s22, 0
      %p231 = por %p229, %p230
      %p232 = scmp.ne.s32.totalorder %s224, %s226
      %p233 = scmp.eq.s32.totalorder %s27, 1
      %p234 = por %p232, %p233
      %p235 = scmp.ne.s32.totalorder %s226, %s227
      %p236 = scmp.eq.s32.totalorder %s27, 0
      %p237 = por %p235, %p236
      %p238 = scmp.ne.s32.totalorder %s226, %s227
      %p239 = scmp.eq.s32.totalorder %s28, 1
      %p240 = por %p238, %p239
      %p242 = scmp.ne.s32.totalorder %s227, %s241
      %p243 = scmp.eq.s32.totalorder %s28, 0
      %p244 = por %p242, %p243
      %s246 = sadd.s32 %s245, 1
      %p249 = scmp.eq.s32.totalorder %s22, 1
      %p250 = scmp.ne.s32.totalorder %s245, %s247
      %p251 = scmp.eq.s32.totalorder %s22, 0
      %p252 = por %p250, %p251
      %p253 = scmp.ne.s32.totalorder %s245, %s247
      %p254 = scmp.eq.s32.totalorder %s27, 1
      %p255 = por %p253, %p254
      %p256 = scmp.ne.s32.totalorder %s247, %s248
      %p257 = scmp.eq.s32.totalorder %s27, 0
      %p258 = por %p256, %p257
      %p259 = scmp.ne.s32.totalorder %s247, %s248
      %p260 = scmp.eq.s32.totalorder %s28, 1
      %p261 = por %p259, %p260
      %p263 = scmp.ne.s32.totalorder %s248, %s262
      %p264 = scmp.eq.s32.totalorder %s28, 0
      %p265 = por %p263, %p264
      %s266 = ssub.s32 %s22, %s29
      %p267 = scmp.eq.s32.totalorder %s266, 0
      %s269 = sadd.s32 %s268, 1
      %s270 = scalar_select %p267, %s268, %s269
      %p273 = pneg %p267
      %p274 = scmp.eq.s32.totalorder %s22, 1
      %p275 = por %p273, %p274
      %p276 = scmp.ne.s32.totalorder %s268, %s271
      %p277 = scmp.eq.s32.totalorder %s22, 0
      %p278 = por %p276, %p277
      %p279 = scmp.ne.s32.totalorder %s268, %s271
      %p280 = scmp.eq.s32.totalorder %s27, 1
      %p281 = por %p279, %p280
      %p282 = scmp.ne.s32.totalorder %s271, %s272
      %p283 = scmp.eq.s32.totalorder %s27, 0
      %p284 = por %p282, %p283
      %p285 = scmp.ne.s32.totalorder %s271, %s272
      %p286 = scmp.eq.s32.totalorder %s28, 1
      %p287 = por %p285, %p286
      %p289 = scmp.ne.s32.totalorder %s272, %s288
      %p290 = scmp.eq.s32.totalorder %s28, 0
      %p291 = por %p289, %p290
      %p292 = scmp.le.s32.totalorder 1, %s22
      %p293 = scmp.lt.s32.totalorder %s22, 3
      %p294 = pnand %p292, %p293
      %p295 = pneg %p294
      // Predicated region
      $region9: #{tpu_custom_call.1} parent=5 // pred_check
        _
      $region10: #{tpu_custom_call.1} parent=5 // pred_check_branch
        %297 = sbr.rel (%p294) target = $region12
      $region11: #{tpu_custom_call.1} parent=5 // pred_region
        %s298 = ssub.s32 %s22, 1
        // Predicated region
        $region13: #{tpu_custom_call.1} parent=11 // pred_check
          %p299 = pneg %p69
        $region14: #{tpu_custom_call.1} parent=11 // pred_check_branch
          %301 = sbr.rel (%p299) target = $region16
        $region15: #{tpu_custom_call.1} parent=11 // pred_region
          _
        $region16: #{tpu_custom_call.1} parent=11 // pred_fallthru
          _
        // Predicated region
        $region17: #{tpu_custom_call.1} parent=11 // pred_check
          %p302 = pneg %p90
        $region18: #{tpu_custom_call.1} parent=11 // pred_check_branch
          %304 = sbr.rel (%p302) target = $region20
        $region19: #{tpu_custom_call.1} parent=11 // pred_region
          _
        $region20: #{tpu_custom_call.1} parent=11 // pred_fallthru
          _
        // Predicated region
        $region21: #{tpu_custom_call.1} parent=11 // pred_check
          %p305 = pneg %p111
        $region22: #{tpu_custom_call.1} parent=11 // pred_check_branch
          %307 = sbr.rel (%p305) target = $region24
        $region23: #{tpu_custom_call.1} parent=11 // pred_region
          _
        $region24: #{tpu_custom_call.1} parent=11 // pred_fallthru
          _
        // Predicated region
        $region25: #{tpu_custom_call.1} parent=11 // pred_check
          %p308 = pneg %p132
        $region26: #{tpu_custom_call.1} parent=11 // pred_check_branch
          %310 = sbr.rel (%p308) target = $region28
        $region27: #{tpu_custom_call.1} parent=11 // pred_region
          _
        $region28: #{tpu_custom_call.1} parent=11 // pred_fallthru
          _
        // Predicated region
        $region29: #{tpu_custom_call.1} parent=11 // pred_check
          %p311 = pneg %p153
        $region30: #{tpu_custom_call.1} parent=11 // pred_check_branch
          %313 = sbr.rel (%p311) target = $region32
        $region31: #{tpu_custom_call.1} parent=11 // pred_region
          _
        $region32: #{tpu_custom_call.1} parent=11 // pred_fallthru
          _
        // Predicated region
        $region33: #{tpu_custom_call.1} parent=11 // pred_check
          %p314 = pneg %p174
        $region34: #{tpu_custom_call.1} parent=11 // pred_check_branch
          %316 = sbr.rel (%p314) target = $region36
        $region35: #{tpu_custom_call.1} parent=11 // pred_region
          _
        $region36: #{tpu_custom_call.1} parent=11 // pred_fallthru
          _
        // Predicated region
        $region37: #{tpu_custom_call.1} parent=11 // pred_check
          %p317 = pneg %p195
        $region38: #{tpu_custom_call.1} parent=11 // pred_check_branch
          %319 = sbr.rel (%p317) target = $region40
        $region39: #{tpu_custom_call.1} parent=11 // pred_region
          _
        $region40: #{tpu_custom_call.1} parent=11 // pred_fallthru
          _
        // Predicated region
        $region41: #{tpu_custom_call.1} parent=11 // pred_check
          %p320 = pneg %p216
        $region42: #{tpu_custom_call.1} parent=11 // pred_check_branch
          %322 = sbr.rel (%p320) target = $region44
        $region43: #{tpu_custom_call.1} parent=11 // pred_region
          _
        $region44: #{tpu_custom_call.1} parent=11 // pred_fallthru
          _
        // Predicated region
        $region45: #{tpu_custom_call.1} parent=11 // pred_check
          %p323 = pneg %p237
        $region46: #{tpu_custom_call.1} parent=11 // pred_check_branch
          %325 = sbr.rel (%p323) target = $region48
        $region47: #{tpu_custom_call.1} parent=11 // pred_region
          _
        $region48: #{tpu_custom_call.1} parent=11 // pred_fallthru
          _
        // Predicated region
        $region49: #{tpu_custom_call.1} parent=11 // pred_check
          %p326 = pneg %p258
        $region50: #{tpu_custom_call.1} parent=11 // pred_check_branch
          %328 = sbr.rel (%p326) target = $region52
        $region51: #{tpu_custom_call.1} parent=11 // pred_region
          _
        $region52: #{tpu_custom_call.1} parent=11 // pred_fallthru
          _
      $region12: #{tpu_custom_call.1} parent=5 // pred_fallthru
        _
      %p329 = scmp.lt.s32.totalorder %s22, 2
      // Predicated region
      $region53: #{tpu_custom_call.1} parent=5 // pred_check
        %p330 = pneg %p329
      $region54: #{tpu_custom_call.1} parent=5 // pred_check_branch
        %332 = sbr.rel (%p330) target = $region56
      $region55: #{tpu_custom_call.1} parent=5 // pred_region
        // Predicated region
        $region57: #{tpu_custom_call.1} parent=55 // pred_check
          %p333 = pneg %p42
        $region58: #{tpu_custom_call.1} parent=55 // pred_check_branch
          %335 = sbr.rel (%p333) target = $region60
        $region59: #{tpu_custom_call.1} parent=55 // pred_region
          %s336 = smul.u32 16, %s22
          %p337 = scmp.lt.s32.totalorder %s336, 31
          %s338 = scalar_select %p337, %s336, 31
          %s339 = smul.addr %s338, 8
          %s340 = scalar_lea.vmem %s0, %s339
          %s341 = smul.u32 16, %s22
        $region60: #{tpu_custom_call.1} parent=55 // pred_fallthru
          _
      $region56: #{tpu_custom_call.1} parent=5 // pred_fallthru
        _
      %p342 = scmp.le.s32.totalorder 1, %s22
      %p343 = scmp.lt.s32.totalorder %s22, 3
      %p344 = pnand %p342, %p343
      %p345 = pneg %p344
      // Predicated region
      $region61: #{tpu_custom_call.1} parent=5 // pred_check
        _
      $region62: #{tpu_custom_call.1} parent=5 // pred_check_branch
        %347 = sbr.rel (%p344) target = $region64
      $region63: #{tpu_custom_call.1} parent=5 // pred_region
        %s348 = ssub.s32 %s22, 1
        %s349 = smul.u32 16, %s27
        %p350 = scmp.lt.s32.totalorder %s349, 31
        %s351 = scalar_select %p350, %s349, 31
        %s352 = smul.addr %s351, 8
        %s353 = scalar_lea.vmem %s0, %s352
        %p354 = pneg %p48
        %p355 = pneg %p45
        %p356 = pneg %p69
        %p357 = pneg %p66
        %p358 = pneg %p90
        %p359 = pneg %p87
        %p360 = pneg %p111
        %p361 = pneg %p108
        %p362 = pneg %p132
        %p363 = pneg %p129
        %p364 = pneg %p153
        %p365 = pneg %p150
        %p366 = pneg %p174
        %p367 = pneg %p171
        %p368 = pneg %p195
        %p369 = pneg %p192
        %p370 = pneg %p216
        %p371 = pneg %p213
        %p372 = pneg %p237
        %p373 = pneg %p234
        %p374 = pneg %p258
        %p375 = pneg %p255
        %p376 = pneg %p284
        %p377 = pneg %p281
        %s378 = sand.u32 %s271, 1
        %s379 = scalar_lea.sflag [#allocation4], %s378
        %s380 = sand.u32 %s271, 1
        %s381 = scalar_lea.vmem [#allocation3], %s380
        %s382 = smul.u32 16, %s27
        %p383 = scmp.lt.s32.totalorder %s382, 31
        %s384 = scalar_select %p383, %s382, 31
        %s385 = smul.addr %s384, 8
        %s386 = scalar_lea.vmem %s0, %s385
        %s387 = smul.u32 16, %s27
        %v388 = vld [vmem:[%s1] sm:$0xff]
        %v389 = vld [vmem:[%s1 + $0x8] sm:$0xff]
        %v390 = vld [vmem:[%s1 + $0x10] sm:$0xff]
        %v391 = vld [vmem:[%s1 + $0x18] sm:$0xff]
        %v392 = vld [vmem:[%s1 + $0x20] sm:$0xff]
        %v393 = vld [vmem:[%s1 + $0x28] sm:$0xff]
        %v394 = vld [vmem:[%s1 + $0x30] sm:$0xff]
        %v395 = vld [vmem:[%s1 + $0x38] sm:$0xff]
        %v396 = vld [vmem:[%s386] sm:$0xff]
        %v397 = vld [vmem:[%s386 + $0x8] sm:$0xff]
        %v398 = vld [vmem:[%s386 + $0x10] sm:$0xff]
        %v399 = vld [vmem:[%s386 + $0x18] sm:$0xff]
        %v400 = vld [vmem:[%s386 + $0x20] sm:$0xff]
        %v401 = vld [vmem:[%s386 + $0x28] sm:$0xff]
        %v402 = vld [vmem:[%s386 + $0x30] sm:$0xff]
        %v403 = vld [vmem:[%s386 + $0x38] sm:$0xff]
        %v404 = vld [vmem:[%s386 + $0x40] sm:$0xff]
        %v405 = vld [vmem:[%s386 + $0x48] sm:$0xff]
        %v406 = vld [vmem:[%s386 + $0x50] sm:$0xff]
        %v407 = vld [vmem:[%s386 + $0x58] sm:$0xff]
        %v408 = vld [vmem:[%s386 + $0x60] sm:$0xff]
        %v409 = vld [vmem:[%s386 + $0x68] sm:$0xff]
        %v410 = vld [vmem:[%s386 + $0x70] sm:$0xff]
        %v411 = vld [vmem:[%s386 + $0x78] sm:$0xff]
        %v412 = vld [vmem:[%s2] sm:$0xff]
        %v413 = vld [vmem:[%s2 + $0x8] sm:$0xff]
        %v414 = vld [vmem:[%s2 + $0x10] sm:$0xff]
        %v415 = vld [vmem:[%s2 + $0x18] sm:$0xff]
        %v416 = vld [vmem:[%s2 + $0x20] sm:$0xff]
        %v417 = vld [vmem:[%s2 + $0x28] sm:$0xff]
        %v418 = vld [vmem:[%s2 + $0x30] sm:$0xff]
        %v419 = vld [vmem:[%s2 + $0x38] sm:$0xff]
        %421 = vset.pattern.permute.xlu0 0
        %422 = vperm.xlu0 %421, %v412
        %v423 = vpop.permute.xlu0 %422
        %426 = vset.pattern.permute.xlu0 0
        %427 = vperm.xlu0 %426, %v413
        %v428 = vpop.permute.xlu0 %427
        %431 = vset.pattern.permute.xlu0 0
        %432 = vperm.xlu0 %431, %v414
        %v433 = vpop.permute.xlu0 %432
        %436 = vset.pattern.permute.xlu0 0
        %437 = vperm.xlu0 %436, %v415
        %v438 = vpop.permute.xlu0 %437
        %441 = vset.pattern.permute.xlu0 0
        %442 = vperm.xlu0 %441, %v416
        %v443 = vpop.permute.xlu0 %442
        %446 = vset.pattern.permute.xlu0 0
        %447 = vperm.xlu0 %446, %v417
        %v448 = vpop.permute.xlu0 %447
        %451 = vset.pattern.permute.xlu0 0
        %452 = vperm.xlu0 %451, %v418
        %v453 = vpop.permute.xlu0 %452
        %456 = vset.pattern.permute.xlu0 0
        %457 = vperm.xlu0 %456, %v419
        %v458 = vpop.permute.xlu0 %457
        %vm460 = vcmask 39936
        %v462 = vsel %vm460, %v388, 0
        %v465 = vsel %vm460, %v389, 0
        %v468 = vsel %vm460, %v390, 0
        %v471 = vsel %vm460, %v391, 0
        %v474 = vsel %vm460, %v392, 0
        %v477 = vsel %vm460, %v393, 0
        %v480 = vsel %vm460, %v394, 0
        %v483 = vsel %vm460, %v395, 0
        %v486 = vsel %vm460, %v396, 0
        %v489 = vsel %vm460, %v397, 0
        %v492 = vsel %vm460, %v398, 0
        %v495 = vsel %vm460, %v399, 0
        %v498 = vsel %vm460, %v400, 0
        %v501 = vsel %vm460, %v401, 0
        %v504 = vsel %vm460, %v402, 0
        %v507 = vsel %vm460, %v403, 0
        %v510 = vsel %vm460, %v404, 0
        %v513 = vsel %vm460, %v405, 0
        %v516 = vsel %vm460, %v406, 0
        %v519 = vsel %vm460, %v407, 0
        %v522 = vsel %vm460, %v408, 0
        %v525 = vsel %vm460, %v409, 0
        %v528 = vsel %vm460, %v410, 0
        %v531 = vsel %vm460, %v411, 0
        %533 = vmatprep.subr.mxu0 0.0
        %534 = vmatpush1.xpose.msra.mxu0 %v486
        %535 = vmatprep.subr.mxu0 0.0
        %536 = vmatpush1.xpose.msra.mxu0 %v489
        %537 = vmatprep.subr.mxu0 0.0
        %538 = vmatpush1.xpose.msra.mxu0 %v492
        %539 = vmatprep.subr.mxu0 0.0
        %540 = vmatpush1.xpose.msra.mxu0 %v495
        %541 = vmatprep.subr.mxu0 0.0
        %542 = vmatpush1.xpose.msra.mxu0 %v498
        %543 = vmatprep.subr.mxu0 0.0
        %544 = vmatpush1.xpose.msra.mxu0 %v501
        %545 = vmatprep.subr.mxu0 0.0
        %546 = vmatpush1.xpose.msra.mxu0 %v504
        %547 = vmatprep.subr.mxu0 0.0
        %548 = vmatpush1.xpose.msra.mxu0 %v507
        %549 = vmatprep.subr.mxu0 0.0
        %550 = vmatpush1.xpose.msra.mxu0 %v510
        %551 = vmatprep.subr.mxu0 0.0
        %552 = vmatpush1.xpose.msra.mxu0 %v513
        %553 = vmatprep.subr.mxu0 0.0
        %554 = vmatpush1.xpose.msra.mxu0 %v516
        %555 = vmatprep.subr.mxu0 0.0
        %556 = vmatpush1.xpose.msra.mxu0 %v519
        %557 = vmatprep.subr.mxu0 0.0
        %558 = vmatpush1.xpose.msra.mxu0 %v522
        %559 = vmatprep.subr.mxu0 0.0
        %560 = vmatpush1.xpose.msra.mxu0 %v525
        %561 = vmatprep.subr.mxu0 0.0
        %562 = vmatpush1.xpose.msra.mxu0 %v528
        %563 = vmatprep.subr.mxu0 0.0
        %564 = vmatpush1.xpose.msra.mxu0 %v531
        %565 = vmatprep.subr.mxu0 0.0
        %566 = vmatpush1.xpose.msra.mxu0 0.0
        %567 = vmatprep.subr.mxu0 0.0
        %568 = vmatpush1.xpose.msra.mxu0 0.0
        %569 = vmatprep.subr.mxu0 0.0
        %570 = vmatpush1.xpose.msra.mxu0 0.0
        %571 = vmatprep.subr.mxu0 0.0
        %572 = vmatpush1.xpose.msra.mxu0 0.0
        %573 = vmatprep.subr.mxu0 0.0
        %574 = vmatpush1.xpose.msra.mxu0 0.0
        %575 = vmatprep.subr.mxu0 0.0
        %576 = vmatpush1.xpose.msra.mxu0 0.0
        %577 = vmatprep.subr.mxu0 0.0
        %578 = vmatpush1.xpose.msra.mxu0 0.0
        %579 = vmatprep.subr.mxu0 0.0
        %580 = vmatpush1.xpose.msra.mxu0 0.0
        %581 = vmatprep.subr.mxu0 0.0
        %582 = vmatpush1.xpose.msra.mxu0 0.0
        %583 = vmatprep.subr.mxu0 0.0
        %584 = vmatpush1.xpose.msra.mxu0 0.0
        %585 = vmatprep.subr.mxu0 0.0
        %586 = vmatpush1.xpose.msra.mxu0 0.0
        %587 = vmatprep.subr.mxu0 0.0
        %588 = vmatpush1.xpose.msra.mxu0 0.0
        %589 = vmatprep.subr.mxu0 0.0
        %590 = vmatpush1.xpose.msra.mxu0 0.0
        %591 = vmatprep.subr.mxu0 0.0
        %592 = vmatpush1.xpose.msra.mxu0 0.0
        %593 = vmatprep.subr.mxu0 0.0
        %594 = vmatpush1.xpose.msra.mxu0 0.0
        %595 = vmatprep.subr.mxu0 0.0
        %596 = vmatpush1.xpose.msra.mxu0 0.0
        %597 = vmatprep.mubr.f32.mxu0 0.0
        %598 = vmatmul.mubr.f32.gmra.mrb[0].mxu0 %v462
        %v599 = vpop.f32.mrb[0].mxu0
        %v600 = vadd.f32 %v423, %v599
        %v601 = vpop.f32.mrb[0].mxu0
        %602 = vmatprep.mubr.f32.mxu0 0.0
        %603 = vmatmul.mubr.f32.gmra.mrb[0].mxu0 %v465
        %v604 = vpop.f32.mrb[0].mxu0
        %v605 = vadd.f32 %v428, %v604
        %v606 = vpop.f32.mrb[0].mxu0
        %607 = vmatprep.mubr.f32.mxu0 0.0
        %608 = vmatmul.mubr.f32.gmra.mrb[0].mxu0 %v468
        %v609 = vpop.f32.mrb[0].mxu0
        %v610 = vadd.f32 %v433, %v609
        %v611 = vpop.f32.mrb[0].mxu0
        %612 = vmatprep.mubr.f32.mxu0 0.0
        %613 = vmatmul.mubr.f32.gmra.mrb[0].mxu0 %v471
        %v614 = vpop.f32.mrb[0].mxu0
        %v615 = vadd.f32 %v438, %v614
        %v616 = vpop.f32.mrb[0].mxu0
        %617 = vmatprep.mubr.f32.mxu0 0.0
        %618 = vmatmul.mubr.f32.gmra.mrb[0].mxu0 %v474
        %v619 = vpop.f32.mrb[0].mxu0
        %v620 = vadd.f32 %v443, %v619
        %v621 = vpop.f32.mrb[0].mxu0
        %622 = vmatprep.mubr.f32.mxu0 0.0
        %623 = vmatmul.mubr.f32.gmra.mrb[0].mxu0 %v477
        %v624 = vpop.f32.mrb[0].mxu0
        %v625 = vadd.f32 %v448, %v624
        %v626 = vpop.f32.mrb[0].mxu0
        %627 = vmatprep.mubr.f32.mxu0 0.0
        %628 = vmatmul.mubr.f32.gmra.mrb[0].mxu0 %v480
        %v629 = vpop.f32.mrb[0].mxu0
        %v630 = vadd.f32 %v453, %v629
        %v631 = vpop.f32.mrb[0].mxu0
        %632 = vmatprep.mubr.f32.mxu0 0.0
        %633 = vmatmul.mubr.f32.gmra.mrb[0].mxu0 %v483
        %v634 = vpop.f32.mrb[0].mxu0
        %v635 = vadd.f32 %v458, %v634
        %v636 = vpop.f32.mrb[0].mxu0
        %637 = vdwg.mxu0
        %v638 = vmax.f32 %v600, 0.0
        %v639 = vmax.f32 %v605, 0.0
        %v640 = vmax.f32 %v610, 0.0
        %v641 = vmax.f32 %v615, 0.0
        %v642 = vmax.f32 %v620, 0.0
        %v643 = vmax.f32 %v625, 0.0
        %v644 = vmax.f32 %v630, 0.0
        %v645 = vmax.f32 %v635, 0.0
        %v646 = vld [vmem:[%s3] sm:$0xff]
        %v647 = vld [vmem:[%s3 + $0x8] sm:$0xff]
        %v648 = vld [vmem:[%s3 + $0x10] sm:$0xff]
        %v649 = vld [vmem:[%s3 + $0x18] sm:$0xff]
        %v650 = vld [vmem:[%s3 + $0x20] sm:$0xff]
        %v651 = vld [vmem:[%s3 + $0x28] sm:$0xff]
        %v652 = vld [vmem:[%s3 + $0x30] sm:$0xff]
        %v653 = vld [vmem:[%s3 + $0x38] sm:$0xff]
        %v654 = vld [vmem:[%s3 + $0x40] sm:$0xff]
        %v655 = vld [vmem:[%s3 + $0x48] sm:$0xff]
        %v656 = vld [vmem:[%s3 + $0x50] sm:$0xff]
        %v657 = vld [vmem:[%s3 + $0x58] sm:$0xff]
        %v658 = vld [vmem:[%s3 + $0x60] sm:$0xff]
        %v659 = vld [vmem:[%s3 + $0x68] sm:$0xff]
        %v660 = vld [vmem:[%s3 + $0x70] sm:$0xff]
        %v661 = vld [vmem:[%s3 + $0x78] sm:$0xff]
        %v662 = vld [vmem:[%s3 + $0x80] sm:$0xff]
        %v663 = vld [vmem:[%s3 + $0x88] sm:$0xff]
        %v664 = vld [vmem:[%s3 + $0x90] sm:$0xff]
        %v665 = vld [vmem:[%s3 + $0x98] sm:$0xff]
        %v666 = vld [vmem:[%s3 + $0xa0] sm:$0xff]
        %v667 = vld [vmem:[%s3 + $0xa8] sm:$0xff]
        %v668 = vld [vmem:[%s3 + $0xb0] sm:$0xff]
        %v669 = vld [vmem:[%s3 + $0xb8] sm:$0xff]
        %v670 = vld [vmem:[%s3 + $0xc0] sm:$0xff]
        %v671 = vld [vmem:[%s4] sm:$0xff]
        %v672 = vld [vmem:[%s4 + $0x8] sm:$0xff]
        %v673 = vld [vmem:[%s4 + $0x10] sm:$0xff]
        %v674 = vld [vmem:[%s4 + $0x18] sm:$0xff]
        %v675 = vld [vmem:[%s4 + $0x20] sm:$0xff]
        %v676 = vld [vmem:[%s4 + $0x28] sm:$0xff]
        %v677 = vld [vmem:[%s4 + $0x30] sm:$0xff]
        %v678 = vld [vmem:[%s4 + $0x38] sm:$0xff]
        %v679 = vld [vmem:[%s4 + $0x40] sm:$0xff]
        %v680 = vld [vmem:[%s4 + $0x48] sm:$0xff]
        %v681 = vld [vmem:[%s4 + $0x50] sm:$0xff]
        %v682 = vld [vmem:[%s4 + $0x58] sm:$0xff]
        %v683 = vld [vmem:[%s4 + $0x60] sm:$0xff]
        %v684 = vld [vmem:[%s4 + $0x68] sm:$0xff]
        %v685 = vld [vmem:[%s4 + $0x70] sm:$0xff]
        %v686 = vld [vmem:[%s4 + $0x78] sm:$0xff]
        %v687 = vld [vmem:[%s4 + $0x80] sm:$0xff]
        %v688 = vld [vmem:[%s4 + $0x88] sm:$0xff]
        %v689 = vld [vmem:[%s4 + $0x90] sm:$0xff]
        %v690 = vld [vmem:[%s4 + $0x98] sm:$0xff]
        %v691 = vld [vmem:[%s4 + $0xa0] sm:$0xff]
        %v692 = vld [vmem:[%s4 + $0xa8] sm:$0xff]
        %v693 = vld [vmem:[%s4 + $0xb0] sm:$0xff]
        %v694 = vld [vmem:[%s4 + $0xb8] sm:$0xff]
        %v695 = vld [vmem:[%s4 + $0xc0] sm:$0xff]
        %697 = vset.pattern.permute.xlu0 0
        %698 = vperm.xlu0 %697, %v671
        %v699 = vpop.permute.xlu0 %698
        %702 = vset.pattern.permute.xlu0 0
        %703 = vperm.xlu0 %702, %v672
        %v704 = vpop.permute.xlu0 %703
        %707 = vset.pattern.permute.xlu0 0
        %708 = vperm.xlu0 %707, %v673
        %v709 = vpop.permute.xlu0 %708
        %712 = vset.pattern.permute.xlu0 0
        %713 = vperm.xlu0 %712, %v674
        %v714 = vpop.permute.xlu0 %713
        %717 = vset.pattern.permute.xlu0 0
        %718 = vperm.xlu0 %717, %v675
        %v719 = vpop.permute.xlu0 %718
        %722 = vset.pattern.permute.xlu0 0
        %723 = vperm.xlu0 %722, %v676
        %v724 = vpop.permute.xlu0 %723
        %727 = vset.pattern.permute.xlu0 0
        %728 = vperm.xlu0 %727, %v677
        %v729 = vpop.permute.xlu0 %728
        %732 = vset.pattern.permute.xlu0 0
        %733 = vperm.xlu0 %732, %v678
        %v734 = vpop.permute.xlu0 %733
        %737 = vset.pattern.permute.xlu0 0
        %738 = vperm.xlu0 %737, %v679
        %v739 = vpop.permute.xlu0 %738
        %742 = vset.pattern.permute.xlu0 0
        %743 = vperm.xlu0 %742, %v680
        %v744 = vpop.permute.xlu0 %743
        %747 = vset.pattern.permute.xlu0 0
        %748 = vperm.xlu0 %747, %v681
        %v749 = vpop.permute.xlu0 %748
        %752 = vset.pattern.permute.xlu0 0
        %753 = vperm.xlu0 %752, %v682
        %v754 = vpop.permute.xlu0 %753
        %757 = vset.pattern.permute.xlu0 0
        %758 = vperm.xlu0 %757, %v683
        %v759 = vpop.permute.xlu0 %758
        %762 = vset.pattern.permute.xlu0 0
        %763 = vperm.xlu0 %762, %v684
        %v764 = vpop.permute.xlu0 %763
        %767 = vset.pattern.permute.xlu0 0
        %768 = vperm.xlu0 %767, %v685
        %v769 = vpop.permute.xlu0 %768
        %772 = vset.pattern.permute.xlu0 0
        %773 = vperm.xlu0 %772, %v686
        %v774 = vpop.permute.xlu0 %773
        %777 = vset.pattern.permute.xlu0 0
        %778 = vperm.xlu0 %777, %v687
        %v779 = vpop.permute.xlu0 %778
        %782 = vset.pattern.permute.xlu0 0
        %783 = vperm.xlu0 %782, %v688
        %v784 = vpop.permute.xlu0 %783
        %787 = vset.pattern.permute.xlu0 0
        %788 = vperm.xlu0 %787, %v689
        %v789 = vpop.permute.xlu0 %788
        %792 = vset.pattern.permute.xlu0 0
        %793 = vperm.xlu0 %792, %v690
        %v794 = vpop.permute.xlu0 %793
        %797 = vset.pattern.permute.xlu0 0
        %798 = vperm.xlu0 %797, %v691
        %v799 = vpop.permute.xlu0 %798
        %802 = vset.pattern.permute.xlu0 0
        %803 = vperm.xlu0 %802, %v692
        %v804 = vpop.permute.xlu0 %803
        %807 = vset.pattern.permute.xlu0 0
        %808 = vperm.xlu0 %807, %v693
        %v809 = vpop.permute.xlu0 %808
        %812 = vset.pattern.permute.xlu0 0
        %813 = vperm.xlu0 %812, %v694
        %v814 = vpop.permute.xlu0 %813
        %817 = vset.pattern.permute.xlu0 0
        %818 = vperm.xlu0 %817, %v695
        %v819 = vpop.permute.xlu0 %818
        %vm821 = vcmask 523264
        %v823 = vsel %vm821, %v646, 0
        %v826 = vsel %vm821, %v647, 0
        %v829 = vsel %vm821, %v648, 0
        %v832 = vsel %vm821, %v649, 0
        %v835 = vsel %vm821, %v650, 0
        %v838 = vsel %vm821, %v651, 0
        %v841 = vsel %vm821, %v652, 0
        %v844 = vsel %vm821, %v653, 0
        %v847 = vsel %vm821, %v654, 0
        %v850 = vsel %vm821, %v655, 0
        %v853 = vsel %vm821, %v656, 0
        %v856 = vsel %vm821, %v657, 0
        %v859 = vsel %vm821, %v658, 0
        %v862 = vsel %vm821, %v659, 0
        %v865 = vsel %vm821, %v660, 0
        %v868 = vsel %vm821, %v661, 0
        %v871 = vsel %vm821, %v662, 0
        %v874 = vsel %vm821, %v663, 0
        %v877 = vsel %vm821, %v664, 0
        %v880 = vsel %vm821, %v665, 0
        %v883 = vsel %vm821, %v666, 0
        %v886 = vsel %vm821, %v667, 0
        %v889 = vsel %vm821, %v668, 0
        %v892 = vsel %vm821, %v669, 0
        %v895 = vsel %vm821, %v670, 0
        %897 = vmatprep.subr.mxu0 0.0
        %898 = vmatpush1.msra.mxu0 %v638
        %899 = vmatprep.subr.mxu0 0.0
        %900 = vmatpush1.msra.mxu0 %v639
        %901 = vmatprep.subr.mxu0 0.0
        %902 = vmatpush1.msra.mxu0 %v640
        %903 = vmatprep.subr.mxu0 0.0
        %904 = vmatpush1.msra.mxu0 %v641
        %905 = vmatprep.subr.mxu0 0.0
        %906 = vmatpush1.msra.mxu0 %v642
        %907 = vmatprep.subr.mxu0 0.0
        %908 = vmatpush1.msra.mxu0 %v643
        %909 = vmatprep.subr.mxu0 0.0
        %910 = vmatpush1.msra.mxu0 %v644
        %911 = vmatprep.subr.mxu0 0.0
        %912 = vmatpush1.msra.mxu0 %v645
        %913 = vmatprep.subr.mxu0 0.0
        %914 = vmatpush1.msra.mxu0 0.0
        %915 = vmatprep.subr.mxu0 0.0
        %916 = vmatpush1.msra.mxu0 0.0
        %917 = vmatprep.subr.mxu0 0.0
        %918 = vmatpush1.msra.mxu0 0.0
        %919 = vmatprep.subr.mxu0 0.0
        %920 = vmatpush1.msra.mxu0 0.0
        %921 = vmatprep.subr.mxu0 0.0
        %922 = vmatpush1.msra.mxu0 0.0
        %923 = vmatprep.subr.mxu0 0.0
        %924 = vmatpush1.msra.mxu0 0.0
        %925 = vmatprep.subr.mxu0 0.0
        %926 = vmatpush1.msra.mxu0 0.0
        %927 = vmatprep.subr.mxu0 0.0
        %928 = vmatpush1.msra.mxu0 0.0
        %929 = vmatprep.subr.mxu0 0.0
        %930 = vmatpush1.msra.mxu0 0.0
        %931 = vmatprep.subr.mxu0 0.0
        %932 = vmatpush1.msra.mxu0 0.0
        %933 = vmatprep.subr.mxu0 0.0
        %934 = vmatpush1.msra.mxu0 0.0
        %935 = vmatprep.subr.mxu0 0.0
        %936 = vmatpush1.msra.mxu0 0.0
        %937 = vmatprep.subr.mxu0 0.0
        %938 = vmatpush1.msra.mxu0 0.0
        %939 = vmatprep.subr.mxu0 0.0
        %940 = vmatpush1.msra.mxu0 0.0
        %941 = vmatprep.subr.mxu0 0.0
        %942 = vmatpush1.msra.mxu0 0.0
        %943 = vmatprep.subr.mxu0 0.0
        %944 = vmatpush1.msra.mxu0 0.0
        %945 = vmatprep.subr.mxu0 0.0
        %946 = vmatpush1.msra.mxu0 0.0
        %947 = vmatprep.subr.mxu0 0.0
        %948 = vmatpush1.msra.mxu0 0.0
        %949 = vmatprep.subr.mxu0 0.0
        %950 = vmatpush1.msra.mxu0 0.0
        %951 = vmatprep.subr.mxu0 0.0
        %952 = vmatpush1.msra.mxu0 0.0
        %953 = vmatprep.subr.mxu0 0.0
        %954 = vmatpush1.msra.mxu0 0.0
        %955 = vmatprep.subr.mxu0 0.0
        %956 = vmatpush1.msra.mxu0 0.0
        %957 = vmatprep.subr.mxu0 0.0
        %958 = vmatpush1.msra.mxu0 0.0
        %959 = vmatprep.subr.mxu0 0.0
        %960 = vmatpush1.msra.mxu0 0.0
        %961 = vmatprep.mubr.f32.mxu0 0.0
        %962 = vmatmul.mubr.f32.gmra.mrb[0].mxu0 %v823
        %v963 = vpop.f32.mrb[0].mxu0
        %v964 = vadd.f32 %v699, %v963
        %v965 = vpop.f32.mrb[0].mxu0
        %966 = vmatprep.mubr.f32.mxu0 0.0
        %967 = vmatmul.mubr.f32.gmra.mrb[0].mxu0 %v826
        %v968 = vpop.f32.mrb[0].mxu0
        %v969 = vadd.f32 %v704, %v968
        %v970 = vpop.f32.mrb[0].mxu0
        %971 = vmatprep.mubr.f32.mxu0 0.0
        %972 = vmatmul.mubr.f32.gmra.mrb[0].mxu0 %v829
        %v973 = vpop.f32.mrb[0].mxu0
        %v974 = vadd.f32 %v709, %v973
        %v975 = vpop.f32.mrb[0].mxu0
        %976 = vmatprep.mubr.f32.mxu0 0.0
        %977 = vmatmul.mubr.f32.gmra.mrb[0].mxu0 %v832
        %v978 = vpop.f32.mrb[0].mxu0
        %v979 = vadd.f32 %v714, %v978
        %v980 = vpop.f32.mrb[0].mxu0
        %981 = vmatprep.mubr.f32.mxu0 0.0
        %982 = vmatmul.mubr.f32.gmra.mrb[0].mxu0 %v835
        %v983 = vpop.f32.mrb[0].mxu0
        %v984 = vadd.f32 %v719, %v983
        %v985 = vpop.f32.mrb[0].mxu0
        %986 = vmatprep.mubr.f32.mxu0 0.0
        %987 = vmatmul.mubr.f32.gmra.mrb[0].mxu0 %v838
        %v988 = vpop.f32.mrb[0].mxu0
        %v989 = vadd.f32 %v724, %v988
        %v990 = vpop.f32.mrb[0].mxu0
        %991 = vmatprep.mubr.f32.mxu0 0.0
        %992 = vmatmul.mubr.f32.gmra.mrb[0].mxu0 %v841
        %v993 = vpop.f32.mrb[0].mxu0
        %v994 = vadd.f32 %v729, %v993
        %v995 = vpop.f32.mrb[0].mxu0
        %996 = vmatprep.mubr.f32.mxu0 0.0
        %997 = vmatmul.mubr.f32.gmra.mrb[0].mxu0 %v844
        %v998 = vpop.f32.mrb[0].mxu0
        %v999 = vadd.f32 %v734, %v998
        %v1000 = vpop.f32.mrb[0].mxu0
        %1001 = vmatprep.mubr.f32.mxu0 0.0
        %1002 = vmatmul.mubr.f32.gmra.mrb[0].mxu0 %v847
        %v1003 = vpop.f32.mrb[0].mxu0
        %v1004 = vadd.f32 %v739, %v1003
        %v1005 = vpop.f32.mrb[0].mxu0
        %1006 = vmatprep.mubr.f32.mxu0 0.0
        %1007 = vmatmul.mubr.f32.gmra.mrb[0].mxu0 %v850
        %v1008 = vpop.f32.mrb[0].mxu0
        %v1009 = vadd.f32 %v744, %v1008
        %v1010 = vpop.f32.mrb[0].mxu0
        %1011 = vmatprep.mubr.f32.mxu0 0.0
        %1012 = vmatmul.mubr.f32.gmra.mrb[0].mxu0 %v853
        %v1013 = vpop.f32.mrb[0].mxu0
        %v1014 = vadd.f32 %v749, %v1013
        %v1015 = vpop.f32.mrb[0].mxu0
        %1016 = vmatprep.mubr.f32.mxu0 0.0
        %1017 = vmatmul.mubr.f32.gmra.mrb[0].mxu0 %v856
        %v1018 = vpop.f32.mrb[0].mxu0
        %v1019 = vadd.f32 %v754, %v1018
        %v1020 = vpop.f32.mrb[0].mxu0
        %1021 = vmatprep.mubr.f32.mxu0 0.0
        %1022 = vmatmul.mubr.f32.gmra.mrb[0].mxu0 %v859
        %v1023 = vpop.f32.mrb[0].mxu0
        %v1024 = vadd.f32 %v759, %v1023
        %v1025 = vpop.f32.mrb[0].mxu0
        %1026 = vmatprep.mubr.f32.mxu0 0.0
        %1027 = vmatmul.mubr.f32.gmra.mrb[0].mxu0 %v862
        %v1028 = vpop.f32.mrb[0].mxu0
        %v1029 = vadd.f32 %v764, %v1028
        %v1030 = vpop.f32.mrb[0].mxu0
        %1031 = vmatprep.mubr.f32.mxu0 0.0
        %1032 = vmatmul.mubr.f32.gmra.mrb[0].mxu0 %v865
        %v1033 = vpop.f32.mrb[0].mxu0
        %v1034 = vadd.f32 %v769, %v1033
        %v1035 = vpop.f32.mrb[0].mxu0
        %1036 = vmatprep.mubr.f32.mxu0 0.0
        %1037 = vmatmul.mubr.f32.gmra.mrb[0].mxu0 %v868
        %v1038 = vpop.f32.mrb[0].mxu0
        %v1039 = vadd.f32 %v774, %v1038
        %v1040 = vpop.f32.mrb[0].mxu0
        %1041 = vmatprep.mubr.f32.mxu0 0.0
        %1042 = vmatmul.mubr.f32.gmra.mrb[0].mxu0 %v871
        %v1043 = vpop.f32.mrb[0].mxu0
        %v1044 = vadd.f32 %v779, %v1043
        %v1045 = vpop.f32.mrb[0].mxu0
        %1046 = vmatprep.mubr.f32.mxu0 0.0
        %1047 = vmatmul.mubr.f32.gmra.mrb[0].mxu0 %v874
        %v1048 = vpop.f32.mrb[0].mxu0
        %v1049 = vadd.f32 %v784, %v1048
        %v1050 = vpop.f32.mrb[0].mxu0
        %1051 = vmatprep.mubr.f32.mxu0 0.0
        %1052 = vmatmul.mubr.f32.gmra.mrb[0].mxu0 %v877
        %v1053 = vpop.f32.mrb[0].mxu0
        %v1054 = vadd.f32 %v789, %v1053
        %v1055 = vpop.f32.mrb[0].mxu0
        %1056 = vmatprep.mubr.f32.mxu0 0.0
        %1057 = vmatmul.mubr.f32.gmra.mrb[0].mxu0 %v880
        %v1058 = vpop.f32.mrb[0].mxu0
        %v1059 = vadd.f32 %v794, %v1058
        %v1060 = vpop.f32.mrb[0].mxu0
        %1061 = vmatprep.mubr.f32.mxu0 0.0
        %1062 = vmatmul.mubr.f32.gmra.mrb[0].mxu0 %v883
        %v1063 = vpop.f32.mrb[0].mxu0
        %v1064 = vadd.f32 %v799, %v1063
        %v1065 = vpop.f32.mrb[0].mxu0
        %1066 = vmatprep.mubr.f32.mxu0 0.0
        %1067 = vmatmul.mubr.f32.gmra.mrb[0].mxu0 %v886
        %v1068 = vpop.f32.mrb[0].mxu0
        %v1069 = vadd.f32 %v804, %v1068
        %v1070 = vpop.f32.mrb[0].mxu0
        %1071 = vmatprep.mubr.f32.mxu0 0.0
        %1072 = vmatmul.mubr.f32.gmra.mrb[0].mxu0 %v889
        %v1073 = vpop.f32.mrb[0].mxu0
        %v1074 = vadd.f32 %v809, %v1073
        %v1075 = vpop.f32.mrb[0].mxu0
        %1076 = vmatprep.mubr.f32.mxu0 0.0
        %1077 = vmatmul.mubr.f32.gmra.mrb[0].mxu0 %v892
        %v1078 = vpop.f32.mrb[0].mxu0
        %v1079 = vadd.f32 %v814, %v1078
        %v1080 = vpop.f32.mrb[0].mxu0
        %1081 = vmatprep.mubr.f32.mxu0 0.0
        %1082 = vmatmul.mubr.f32.gmra.mrb[0].mxu0 %v895
        %v1083 = vpop.f32.mrb[0].mxu0
        %v1084 = vadd.f32 %v819, %v1083
        %v1085 = vpop.f32.mrb[0].mxu0
        %1086 = vdwg.mxu0
        %v1087 = vmax.f32 %v964, 0.0
        %v1088 = vmax.f32 %v969, 0.0
        %v1089 = vmax.f32 %v974, 0.0
        %v1090 = vmax.f32 %v979, 0.0
        %v1091 = vmax.f32 %v984, 0.0
        %v1092 = vmax.f32 %v989, 0.0
        %v1093 = vmax.f32 %v994, 0.0
        %v1094 = vmax.f32 %v999, 0.0
        %v1095 = vmax.f32 %v1004, 0.0
        %v1096 = vmax.f32 %v1009, 0.0
        %v1097 = vmax.f32 %v1014, 0.0
        %v1098 = vmax.f32 %v1019, 0.0
        %v1099 = vmax.f32 %v1024, 0.0
        %v1100 = vmax.f32 %v1029, 0.0
        %v1101 = vmax.f32 %v1034, 0.0
        %v1102 = vmax.f32 %v1039, 0.0
        %v1103 = vmax.f32 %v1044, 0.0
        %v1104 = vmax.f32 %v1049, 0.0
        %v1105 = vmax.f32 %v1054, 0.0
        %v1106 = vmax.f32 %v1059, 0.0
        %v1107 = vmax.f32 %v1064, 0.0
        %v1108 = vmax.f32 %v1069, 0.0
        %v1109 = vmax.f32 %v1074, 0.0
        %v1110 = vmax.f32 %v1079, 0.0
        %v1111 = vmax.f32 %v1084, 0.0
        %v1112 = vld [vmem:[%s5] sm:$0xff]
        %v1113 = vld [vmem:[%s5 + $0x8] sm:$0xff]
        %v1114 = vld [vmem:[%s5 + $0x10] sm:$0xff]
        %v1115 = vld [vmem:[%s5 + $0x18] sm:$0xff]
        %v1116 = vld [vmem:[%s5 + $0x20] sm:$0xff]
        %v1117 = vld [vmem:[%s5 + $0x28] sm:$0xff]
        %v1118 = vld [vmem:[%s5 + $0x30] sm:$0xff]
        %v1119 = vld [vmem:[%s5 + $0x38] sm:$0xff]
        %v1120 = vld [vmem:[%s5 + $0x40] sm:$0xff]
        %v1121 = vld [vmem:[%s5 + $0x48] sm:$0xff]
        %v1122 = vld [vmem:[%s5 + $0x50] sm:$0xff]
        %v1123 = vld [vmem:[%s5 + $0x58] sm:$0xff]
        %v1124 = vld [vmem:[%s5 + $0x60] sm:$0xff]
        %v1125 = vld [vmem:[%s5 + $0x68] sm:$0xff]
        %v1126 = vld [vmem:[%s5 + $0x70] sm:$0xff]
        %v1127 = vld [vmem:[%s5 + $0x78] sm:$0xff]
        %v1128 = vld [vmem:[%s5 + $0x80] sm:$0xff]
        %v1129 = vld [vmem:[%s5 + $0x88] sm:$0xff]
        %v1130 = vld [vmem:[%s5 + $0x90] sm:$0xff]
        %v1131 = vld [vmem:[%s5 + $0x98] sm:$0xff]
        %v1132 = vld [vmem:[%s5 + $0xa0] sm:$0xff]
        %v1133 = vld [vmem:[%s5 + $0xa8] sm:$0xff]
        %v1134 = vld [vmem:[%s5 + $0xb0] sm:$0xff]
        %v1135 = vld [vmem:[%s5 + $0xb8] sm:$0xff]
        %v1136 = vld [vmem:[%s5 + $0xc0] sm:$0xff]
        %v1137 = vld [vmem:[%s5 + $0xc8] sm:$0xff]
        %v1138 = vld [vmem:[%s5 + $0xd0] sm:$0xff]
        %v1139 = vld [vmem:[%s5 + $0xd8] sm:$0xff]
        %v1140 = vld [vmem:[%s5 + $0xe0] sm:$0xff]
        %v1141 = vld [vmem:[%s5 + $0xe8] sm:$0xff]
        %v1142 = vld [vmem:[%s5 + $0xf0] sm:$0xff]
        %v1143 = vld [vmem:[%s5 + $0xf8] sm:$0xff]
        %v1144 = vld [vmem:[%s5 + $0x100] sm:$0xff]
        %v1145 = vld [vmem:[%s5 + $0x108] sm:$0xff]
        %v1146 = vld [vmem:[%s5 + $0x110] sm:$0xff]
        %v1147 = vld [vmem:[%s5 + $0x118] sm:$0xff]
        %v1148 = vld [vmem:[%s5 + $0x120] sm:$0x3f]
        %v1149 = vld [vmem:[%s5 + $0x128] sm:$0x3f]
        %v1150 = vld [vmem:[%s6] sm:$0xff]
        %v1151 = vld [vmem:[%s6 + $0x8] sm:$0xff]
        %v1152 = vld [vmem:[%s6 + $0x10] sm:$0xff]
        %v1153 = vld [vmem:[%s6 + $0x18] sm:$0xff]
        %v1154 = vld [vmem:[%s6 + $0x20] sm:$0xff]
        %v1155 = vld [vmem:[%s6 + $0x28] sm:$0xff]
        %v1156 = vld [vmem:[%s6 + $0x30] sm:$0xff]
        %v1157 = vld [vmem:[%s6 + $0x38] sm:$0xff]
        %v1158 = vld [vmem:[%s6 + $0x40] sm:$0xff]
        %v1159 = vld [vmem:[%s6 + $0x48] sm:$0xff]
        %v1160 = vld [vmem:[%s6 + $0x50] sm:$0xff]
        %v1161 = vld [vmem:[%s6 + $0x58] sm:$0xff]
        %v1162 = vld [vmem:[%s6 + $0x60] sm:$0xff]
        %v1163 = vld [vmem:[%s6 + $0x68] sm:$0xff]
        %v1164 = vld [vmem:[%s6 + $0x70] sm:$0xff]
        %v1165 = vld [vmem:[%s6 + $0x78] sm:$0xff]
        %v1166 = vld [vmem:[%s6 + $0x80] sm:$0xff]
        %v1167 = vld [vmem:[%s6 + $0x88] sm:$0xff]
        %v1168 = vld [vmem:[%s6 + $0x90] sm:$0x3f]
        %1170 = vset.pattern.permute.xlu0 0
        %1171 = vperm.xlu0 %1170, %v1150
        %v1172 = vpop.permute.xlu0 %1171
        %1175 = vset.pattern.permute.xlu0 0
        %1176 = vperm.xlu0 %1175, %v1151
        %v1177 = vpop.permute.xlu0 %1176
        %1180 = vset.pattern.permute.xlu0 0
        %1181 = vperm.xlu0 %1180, %v1152
        %v1182 = vpop.permute.xlu0 %1181
        %1185 = vset.pattern.permute.xlu0 0
        %1186 = vperm.xlu0 %1185, %v1153
        %v1187 = vpop.permute.xlu0 %1186
        %1190 = vset.pattern.permute.xlu0 0
        %1191 = vperm.xlu0 %1190, %v1154
        %v1192 = vpop.permute.xlu0 %1191
        %1195 = vset.pattern.permute.xlu0 0
        %1196 = vperm.xlu0 %1195, %v1155
        %v1197 = vpop.permute.xlu0 %1196
        %1200 = vset.pattern.permute.xlu0 0
        %1201 = vperm.xlu0 %1200, %v1156
        %v1202 = vpop.permute.xlu0 %1201
        %1205 = vset.pattern.permute.xlu0 0
        %1206 = vperm.xlu0 %1205, %v1157
        %v1207 = vpop.permute.xlu0 %1206
        %1210 = vset.pattern.permute.xlu0 0
        %1211 = vperm.xlu0 %1210, %v1158
        %v1212 = vpop.permute.xlu0 %1211
        %1215 = vset.pattern.permute.xlu0 0
        %1216 = vperm.xlu0 %1215, %v1159
        %v1217 = vpop.permute.xlu0 %1216
        %1220 = vset.pattern.permute.xlu0 0
        %1221 = vperm.xlu0 %1220, %v1160
        %v1222 = vpop.permute.xlu0 %1221
        %1225 = vset.pattern.permute.xlu0 0
        %1226 = vperm.xlu0 %1225, %v1161
        %v1227 = vpop.permute.xlu0 %1226
        %1230 = vset.pattern.permute.xlu0 0
        %1231 = vperm.xlu0 %1230, %v1162
        %v1232 = vpop.permute.xlu0 %1231
        %1235 = vset.pattern.permute.xlu0 0
        %1236 = vperm.xlu0 %1235, %v1163
        %v1237 = vpop.permute.xlu0 %1236
        %1240 = vset.pattern.permute.xlu0 0
        %1241 = vperm.xlu0 %1240, %v1164
        %v1242 = vpop.permute.xlu0 %1241
        %1245 = vset.pattern.permute.xlu0 0
        %1246 = vperm.xlu0 %1245, %v1165
        %v1247 = vpop.permute.xlu0 %1246
        %1250 = vset.pattern.permute.xlu0 0
        %1251 = vperm.xlu0 %1250, %v1166
        %v1252 = vpop.permute.xlu0 %1251
        %1255 = vset.pattern.permute.xlu0 0
        %1256 = vperm.xlu0 %1255, %v1167
        %v1257 = vpop.permute.xlu0 %1256
        %1260 = vset.pattern.permute.xlu0 0
        %1261 = vperm.xlu0 %1260, %v1168
        %v1262 = vpop.permute.xlu0 %1261
        %vm1264 = vcmask 588800
        %v1266 = vsel %vm1264, %v1113, 0
        %v1269 = vsel %vm1264, %v1115, 0
        %v1272 = vsel %vm1264, %v1117, 0
        %v1275 = vsel %vm1264, %v1119, 0
        %v1278 = vsel %vm1264, %v1121, 0
        %v1281 = vsel %vm1264, %v1123, 0
        %v1284 = vsel %vm1264, %v1125, 0
        %v1287 = vsel %vm1264, %v1127, 0
        %v1290 = vsel %vm1264, %v1129, 0
        %v1293 = vsel %vm1264, %v1131, 0
        %v1296 = vsel %vm1264, %v1133, 0
        %v1299 = vsel %vm1264, %v1135, 0
        %v1302 = vsel %vm1264, %v1137, 0
        %v1305 = vsel %vm1264, %v1139, 0
        %v1308 = vsel %vm1264, %v1141, 0
        %v1311 = vsel %vm1264, %v1143, 0
        %v1314 = vsel %vm1264, %v1145, 0
        %v1317 = vsel %vm1264, %v1147, 0
        %v1320 = vsel %vm1264, %v1149, 0
        %1322 = vmatprep.subr.mxu0 0.0
        %1323 = vmatpush1.msra.mxu0 %v1087
        %1324 = vmatprep.subr.mxu0 0.0
        %1325 = vmatpush1.msra.mxu0 %v1088
        %1326 = vmatprep.subr.mxu0 0.0
        %1327 = vmatpush1.msra.mxu0 %v1089
        %1328 = vmatprep.subr.mxu0 0.0
        %1329 = vmatpush1.msra.mxu0 %v1090
        %1330 = vmatprep.subr.mxu0 0.0
        %1331 = vmatpush1.msra.mxu0 %v1091
        %1332 = vmatprep.subr.mxu0 0.0
        %1333 = vmatpush1.msra.mxu0 %v1092
        %1334 = vmatprep.subr.mxu0 0.0
        %1335 = vmatpush1.msra.mxu0 %v1093
        %1336 = vmatprep.subr.mxu0 0.0
        %1337 = vmatpush1.msra.mxu0 %v1094
        %1338 = vmatprep.subr.mxu0 0.0
        %1339 = vmatpush1.msra.mxu0 %v1095
        %1340 = vmatprep.subr.mxu0 0.0
        %1341 = vmatpush1.msra.mxu0 %v1096
        %1342 = vmatprep.subr.mxu0 0.0
        %1343 = vmatpush1.msra.mxu0 %v1097
        %1344 = vmatprep.subr.mxu0 0.0
        %1345 = vmatpush1.msra.mxu0 %v1098
        %1346 = vmatprep.subr.mxu0 0.0
        %1347 = vmatpush1.msra.mxu0 %v1099
        %1348 = vmatprep.subr.mxu0 0.0
        %1349 = vmatpush1.msra.mxu0 %v1100
        %1350 = vmatprep.subr.mxu0 0.0
        %1351 = vmatpush1.msra.mxu0 %v1101
        %1352 = vmatprep.subr.mxu0 0.0
        %1353 = vmatpush1.msra.mxu0 %v1102
        %1354 = vmatprep.subr.mxu0 0.0
        %1355 = vmatpush1.msra.mxu0 %v1103
        %1356 = vmatprep.subr.mxu0 0.0
        %1357 = vmatpush1.msra.mxu0 %v1104
        %1358 = vmatprep.subr.mxu0 0.0
        %1359 = vmatpush1.msra.mxu0 %v1105
        %1360 = vmatprep.subr.mxu0 0.0
        %1361 = vmatpush1.msra.mxu0 %v1106
        %1362 = vmatprep.subr.mxu0 0.0
        %1363 = vmatpush1.msra.mxu0 %v1107
        %1364 = vmatprep.subr.mxu0 0.0
        %1365 = vmatpush1.msra.mxu0 %v1108
        %1366 = vmatprep.subr.mxu0 0.0
        %1367 = vmatpush1.msra.mxu0 %v1109
        %1368 = vmatprep.subr.mxu0 0.0
        %1369 = vmatpush1.msra.mxu0 %v1110
        %1370 = vmatprep.subr.mxu0 0.0
        %1371 = vmatpush1.msra.mxu0 %v1111
        %1372 = vmatprep.subr.mxu0 0.0
        %1373 = vmatpush1.msra.mxu0 0.0
        %1374 = vmatprep.subr.mxu0 0.0
        %1375 = vmatpush1.msra.mxu0 0.0
        %1376 = vmatprep.subr.mxu0 0.0
        %1377 = vmatpush1.msra.mxu0 0.0
        %1378 = vmatprep.subr.mxu0 0.0
        %1379 = vmatpush1.msra.mxu0 0.0
        %1380 = vmatprep.subr.mxu0 0.0
        %1381 = vmatpush1.msra.mxu0 0.0
        %1382 = vmatprep.subr.mxu0 0.0
        %1383 = vmatpush1.msra.mxu0 0.0
        %1384 = vmatprep.subr.mxu0 0.0
        %1385 = vmatpush1.msra.mxu0 0.0
        %1386 = vmatprep.mubr.f32.mxu0 %v1266
        %1387 = vmatmul.mubr.f32.gmra.mrb[0].mxu0 %v1112
        %v1388 = vpop.f32.mrb[0].mxu0
        %v1389 = vadd.f32 %v1172, %v1388
        %v1390 = vpop.f32.mrb[0].mxu0
        %1391 = vmatprep.mubr.f32.mxu0 %v1269
        %1392 = vmatmul.mubr.f32.gmra.mrb[0].mxu0 %v1114
        %v1393 = vpop.f32.mrb[0].mxu0
        %v1394 = vadd.f32 %v1177, %v1393
        %v1395 = vpop.f32.mrb[0].mxu0
        %1396 = vmatprep.mubr.f32.mxu0 %v1272
        %1397 = vmatmul.mubr.f32.gmra.mrb[0].mxu0 %v1116
        %v1398 = vpop.f32.mrb[0].mxu0
        %v1399 = vadd.f32 %v1182, %v1398
        %v1400 = vpop.f32.mrb[0].mxu0
        %1401 = vmatprep.mubr.f32.mxu0 %v1275
        %1402 = vmatmul.mubr.f32.gmra.mrb[0].mxu0 %v1118
        %v1403 = vpop.f32.mrb[0].mxu0
        %v1404 = vadd.f32 %v1187, %v1403
        %v1405 = vpop.f32.mrb[0].mxu0
        %1406 = vmatprep.mubr.f32.mxu0 %v1278
        %1407 = vmatmul.mubr.f32.gmra.mrb[0].mxu0 %v1120
        %v1408 = vpop.f32.mrb[0].mxu0
        %v1409 = vadd.f32 %v1192, %v1408
        %v1410 = vpop.f32.mrb[0].mxu0
        %1411 = vmatprep.mubr.f32.mxu0 %v1281
        %1412 = vmatmul.mubr.f32.gmra.mrb[0].mxu0 %v1122
        %v1413 = vpop.f32.mrb[0].mxu0
        %v1414 = vadd.f32 %v1197, %v1413
        %v1415 = vpop.f32.mrb[0].mxu0
        %1416 = vmatprep.mubr.f32.mxu0 %v1284
        %1417 = vmatmul.mubr.f32.gmra.mrb[0].mxu0 %v1124
        %v1418 = vpop.f32.mrb[0].mxu0
        %v1419 = vadd.f32 %v1202, %v1418
        %v1420 = vpop.f32.mrb[0].mxu0
        %1421 = vmatprep.mubr.f32.mxu0 %v1287
        %1422 = vmatmul.mubr.f32.gmra.mrb[0].mxu0 %v1126
        %v1423 = vpop.f32.mrb[0].mxu0
        %v1424 = vadd.f32 %v1207, %v1423
        %v1425 = vpop.f32.mrb[0].mxu0
        %1426 = vmatprep.mubr.f32.mxu0 %v1290
        %1427 = vmatmul.mubr.f32.gmra.mrb[0].mxu0 %v1128
        %v1428 = vpop.f32.mrb[0].mxu0
        %v1429 = vadd.f32 %v1212, %v1428
        %v1430 = vpop.f32.mrb[0].mxu0
        %1431 = vmatprep.mubr.f32.mxu0 %v1293
        %1432 = vmatmul.mubr.f32.gmra.mrb[0].mxu0 %v1130
        %v1433 = vpop.f32.mrb[0].mxu0
        %v1434 = vadd.f32 %v1217, %v1433
        %v1435 = vpop.f32.mrb[0].mxu0
        %1436 = vmatprep.mubr.f32.mxu0 %v1296
        %1437 = vmatmul.mubr.f32.gmra.mrb[0].mxu0 %v1132
        %v1438 = vpop.f32.mrb[0].mxu0
        %v1439 = vadd.f32 %v1222, %v1438
        %v1440 = vpop.f32.mrb[0].mxu0
        %1441 = vmatprep.mubr.f32.mxu0 %v1299
        %1442 = vmatmul.mubr.f32.gmra.mrb[0].mxu0 %v1134
        %v1443 = vpop.f32.mrb[0].mxu0
        %v1444 = vadd.f32 %v1227, %v1443
        %v1445 = vpop.f32.mrb[0].mxu0
        %1446 = vmatprep.mubr.f32.mxu0 %v1302
        %1447 = vmatmul.mubr.f32.gmra.mrb[0].mxu0 %v1136
        %v1448 = vpop.f32.mrb[0].mxu0
        %v1449 = vadd.f32 %v1232, %v1448
        %v1450 = vpop.f32.mrb[0].mxu0
        %1451 = vmatprep.mubr.f32.mxu0 %v1305
        %1452 = vmatmul.mubr.f32.gmra.mrb[0].mxu0 %v1138
        %v1453 = vpop.f32.mrb[0].mxu0
        %v1454 = vadd.f32 %v1237, %v1453
        %v1455 = vpop.f32.mrb[0].mxu0
        %1456 = vmatprep.mubr.f32.mxu0 %v1308
        %1457 = vmatmul.mubr.f32.gmra.mrb[0].mxu0 %v1140
        %v1458 = vpop.f32.mrb[0].mxu0
        %v1459 = vadd.f32 %v1242, %v1458
        %v1460 = vpop.f32.mrb[0].mxu0
        %1461 = vmatprep.mubr.f32.mxu0 %v1311
        %1462 = vmatmul.mubr.f32.gmra.mrb[0].mxu0 %v1142
        %v1463 = vpop.f32.mrb[0].mxu0
        %v1464 = vadd.f32 %v1247, %v1463
        %v1465 = vpop.f32.mrb[0].mxu0
        %1466 = vmatprep.mubr.f32.mxu0 %v1314
        %1467 = vmatmul.mubr.f32.gmra.mrb[0].mxu0 %v1144
        %v1468 = vpop.f32.mrb[0].mxu0
        %v1469 = vadd.f32 %v1252, %v1468
        %v1470 = vpop.f32.mrb[0].mxu0
        %1471 = vmatprep.mubr.f32.mxu0 %v1317
        %1472 = vmatmul.mubr.f32.gmra.mrb[0].mxu0 %v1146
        %v1473 = vpop.f32.mrb[0].mxu0
        %v1474 = vadd.f32 %v1257, %v1473
        %v1475 = vpop.f32.mrb[0].mxu0
        %1476 = vmatprep.mubr.f32.mxu0 %v1320
        %1477 = vmatmul.mubr.f32.gmra.mrb[0].mxu0 %v1148
        %v1478 = vpop.f32.mrb[0].mxu0
        %v1479 = vadd.f32 %v1262, %v1478
        %v1480 = vpop.f32.mrb[0].mxu0
        %1481 = vdwg.mxu0
        %v1482 = vmax.f32 %v1389, 0.0
        %v1483 = vmax.f32 %v1394, 0.0
        %v1484 = vmax.f32 %v1399, 0.0
        %v1485 = vmax.f32 %v1404, 0.0
        %v1486 = vmax.f32 %v1409, 0.0
        %v1487 = vmax.f32 %v1414, 0.0
        %v1488 = vmax.f32 %v1419, 0.0
        %v1489 = vmax.f32 %v1424, 0.0
        %v1490 = vmax.f32 %v1429, 0.0
        %v1491 = vmax.f32 %v1434, 0.0
        %v1492 = vmax.f32 %v1439, 0.0
        %v1493 = vmax.f32 %v1444, 0.0
        %v1494 = vmax.f32 %v1449, 0.0
        %v1495 = vmax.f32 %v1454, 0.0
        %v1496 = vmax.f32 %v1459, 0.0
        %v1497 = vmax.f32 %v1464, 0.0
        %v1498 = vmax.f32 %v1469, 0.0
        %v1499 = vmax.f32 %v1474, 0.0
        %v1500 = vmax.f32 %v1479, 0.0
        %v1501 = vld [vmem:[%s7] sm:$0xff]
        %v1502 = vld [vmem:[%s7 + $0x8] sm:$0xff]
        %v1503 = vld [vmem:[%s7 + $0x10] sm:$0xff]
        %v1504 = vld [vmem:[%s7 + $0x18] sm:$0xff]
        %v1505 = vld [vmem:[%s7 + $0x20] sm:$0xff]
        %v1506 = vld [vmem:[%s7 + $0x28] sm:$0xff]
        %v1507 = vld [vmem:[%s7 + $0x30] sm:$0x3f]
        %v1508 = vld [vmem:[%s7 + $0x38] sm:$0x3f]
        %v1509 = vld [vmem:[%s8] sm:$0xff]
        %v1510 = vld [vmem:[%s8 + $0x8] sm:$0xff]
        %v1511 = vld [vmem:[%s8 + $0x10] sm:$0xff]
        %v1512 = vld [vmem:[%s8 + $0x18] sm:$0x3f]
        %1514 = vset.pattern.permute.xlu0 0
        %1515 = vperm.xlu0 %1514, %v1509
        %v1516 = vpop.permute.xlu0 %1515
        %1519 = vset.pattern.permute.xlu0 0
        %1520 = vperm.xlu0 %1519, %v1510
        %v1521 = vpop.permute.xlu0 %1520
        %1524 = vset.pattern.permute.xlu0 0
        %1525 = vperm.xlu0 %1524, %v1511
        %v1526 = vpop.permute.xlu0 %1525
        %1529 = vset.pattern.permute.xlu0 0
        %1530 = vperm.xlu0 %1529, %v1512
        %v1531 = vpop.permute.xlu0 %1530
        %vm1533 = vcmask 179200
        %v1535 = vsel %vm1533, %v1502, 0
        %v1538 = vsel %vm1533, %v1504, 0
        %v1541 = vsel %vm1533, %v1506, 0
        %v1544 = vsel %vm1533, %v1508, 0
        %vm1546 = vcmask 1045504
        %v1548 = vsel %vm1546, %v1500, 0
        %1550 = vmatprep.subr.mxu0 0.0
        %1551 = vmatpush1.msra.mxu0 %v1482
        %1552 = vmatprep.subr.mxu0 0.0
        %1553 = vmatpush1.msra.mxu0 %v1483
        %1554 = vmatprep.subr.mxu0 0.0
        %1555 = vmatpush1.msra.mxu0 %v1484
        %1556 = vmatprep.subr.mxu0 0.0
        %1557 = vmatpush1.msra.mxu0 %v1485
        %1558 = vmatprep.subr.mxu0 0.0
        %1559 = vmatpush1.msra.mxu0 %v1486
        %1560 = vmatprep.subr.mxu0 0.0
        %1561 = vmatpush1.msra.mxu0 %v1487
        %1562 = vmatprep.subr.mxu0 0.0
        %1563 = vmatpush1.msra.mxu0 %v1488
        %1564 = vmatprep.subr.mxu0 0.0
        %1565 = vmatpush1.msra.mxu0 %v1489
        %1566 = vmatprep.subr.mxu0 0.0
        %1567 = vmatpush1.msra.mxu0 %v1490
        %1568 = vmatprep.subr.mxu0 0.0
        %1569 = vmatpush1.msra.mxu0 %v1491
        %1570 = vmatprep.subr.mxu0 0.0
        %1571 = vmatpush1.msra.mxu0 %v1492
        %1572 = vmatprep.subr.mxu0 0.0
        %1573 = vmatpush1.msra.mxu0 %v1493
        %1574 = vmatprep.subr.mxu0 0.0
        %1575 = vmatpush1.msra.mxu0 %v1494
        %1576 = vmatprep.subr.mxu0 0.0
        %1577 = vmatpush1.msra.mxu0 %v1495
        %1578 = vmatprep.subr.mxu0 0.0
        %1579 = vmatpush1.msra.mxu0 %v1496
        %1580 = vmatprep.subr.mxu0 0.0
        %1581 = vmatpush1.msra.mxu0 %v1497
        %1582 = vmatprep.subr.mxu0 0.0
        %1583 = vmatpush1.msra.mxu0 %v1498
        %1584 = vmatprep.subr.mxu0 0.0
        %1585 = vmatpush1.msra.mxu0 %v1499
        %1586 = vmatprep.subr.mxu0 0.0
        %1587 = vmatpush1.msra.mxu0 %v1548
        %1588 = vmatprep.subr.mxu0 0.0
        %1589 = vmatpush1.msra.mxu0 0.0
        %1590 = vmatprep.subr.mxu0 0.0
        %1591 = vmatpush1.msra.mxu0 0.0
        %1592 = vmatprep.subr.mxu0 0.0
        %1593 = vmatpush1.msra.mxu0 0.0
        %1594 = vmatprep.subr.mxu0 0.0
        %1595 = vmatpush1.msra.mxu0 0.0
        %1596 = vmatprep.subr.mxu0 0.0
        %1597 = vmatpush1.msra.mxu0 0.0
        %1598 = vmatprep.subr.mxu0 0.0
        %1599 = vmatpush1.msra.mxu0 0.0
        %1600 = vmatprep.subr.mxu0 0.0
        %1601 = vmatpush1.msra.mxu0 0.0
        %1602 = vmatprep.subr.mxu0 0.0
        %1603 = vmatpush1.msra.mxu0 0.0
        %1604 = vmatprep.subr.mxu0 0.0
        %1605 = vmatpush1.msra.mxu0 0.0
        %1606 = vmatprep.subr.mxu0 0.0
        %1607 = vmatpush1.msra.mxu0 0.0
        %1608 = vmatprep.subr.mxu0 0.0
        %1609 = vmatpush1.msra.mxu0 0.0
        %1610 = vmatprep.subr.mxu0 0.0
        %1611 = vmatpush1.msra.mxu0 0.0
        %1612 = vmatprep.subr.mxu0 0.0
        %1613 = vmatpush1.msra.mxu0 0.0
        %1614 = vmatprep.mubr.f32.mxu0 %v1535
        %1615 = vmatmul.mubr.f32.gmra.mrb[0].mxu0 %v1501
        %v1616 = vpop.f32.mrb[0].mxu0
        %v1617 = vadd.f32 %v1516, %v1616
        %v1618 = vpop.f32.mrb[0].mxu0
        %1619 = vmatprep.mubr.f32.mxu0 %v1538
        %1620 = vmatmul.mubr.f32.gmra.mrb[0].mxu0 %v1503
        %v1621 = vpop.f32.mrb[0].mxu0
        %v1622 = vadd.f32 %v1521, %v1621
        %v1623 = vpop.f32.mrb[0].mxu0
        %1624 = vmatprep.mubr.f32.mxu0 %v1541
        %1625 = vmatmul.mubr.f32.gmra.mrb[0].mxu0 %v1505
        %v1626 = vpop.f32.mrb[0].mxu0
        %v1627 = vadd.f32 %v1526, %v1626
        %v1628 = vpop.f32.mrb[0].mxu0
        %1629 = vmatprep.mubr.f32.mxu0 %v1544
        %1630 = vmatmul.mubr.f32.gmra.mrb[0].mxu0 %v1507
        %v1631 = vpop.f32.mrb[0].mxu0
        %v1632 = vadd.f32 %v1531, %v1631
        %v1633 = vpop.f32.mrb[0].mxu0
        %1634 = vdwg.mxu0
        %v1635 = vmax.f32 %v1617, 0.0
        %v1636 = vmax.f32 %v1622, 0.0
        %v1637 = vmax.f32 %v1627, 0.0
        %v1638 = vmax.f32 %v1632, 0.0
        %v1639 = vld [vmem:[%s9] sm:$0x1]
        %v1640 = vld [vmem:[#allocation2] sm:$0x1]
        %1642 = vset.pattern.permute.xlu0 0
        %1643 = vperm.xlu0 %1642, %v1640
        %v1644 = vpop.permute.xlu0 %1643
        %v1646 = vlaneseq
        %v1647 = vshrl.u32 %v1646, 7
        %v1648 = vsub.s32 0, %v1647
        %v1649 = vrot.slane %v1644, %v1648
        %vm1650 = vcmask 244736
        %v1652 = vsel %vm1650, %v1639, 0
        %v1655 = vsel %vm1546, %v1638, 0
        %1657 = vmatprep.subr.mxu0 0.0
        %1658 = vmatpush1.msra.mxu0 %v1635
        %1659 = vmatprep.subr.mxu0 0.0
        %1660 = vmatpush1.msra.mxu0 %v1636
        %1661 = vmatprep.subr.mxu0 0.0
        %1662 = vmatpush1.msra.mxu0 %v1637
        %1663 = vmatprep.subr.mxu0 0.0
        %1664 = vmatpush1.msra.mxu0 %v1655
        %1665 = vmatprep.subr.mxu0 0.0
        %1666 = vmatpush1.msra.mxu0 0.0
        %1667 = vmatprep.subr.mxu0 0.0
        %1668 = vmatpush1.msra.mxu0 0.0
        %1669 = vmatprep.subr.mxu0 0.0
        %1670 = vmatpush1.msra.mxu0 0.0
        %1671 = vmatprep.subr.mxu0 0.0
        %1672 = vmatpush1.msra.mxu0 0.0
        %1673 = vmatprep.subr.mxu0 0.0
        %1674 = vmatpush1.msra.mxu0 0.0
        %1675 = vmatprep.subr.mxu0 0.0
        %1676 = vmatpush1.msra.mxu0 0.0
        %1677 = vmatprep.subr.mxu0 0.0
        %1678 = vmatpush1.msra.mxu0 0.0
        %1679 = vmatprep.subr.mxu0 0.0
        %1680 = vmatpush1.msra.mxu0 0.0
        %1681 = vmatprep.subr.mxu0 0.0
        %1682 = vmatpush1.msra.mxu0 0.0
        %1683 = vmatprep.subr.mxu0 0.0
        %1684 = vmatpush1.msra.mxu0 0.0
        %1685 = vmatprep.subr.mxu0 0.0
        %1686 = vmatpush1.msra.mxu0 0.0
        %1687 = vmatprep.subr.mxu0 0.0
        %1688 = vmatpush1.msra.mxu0 0.0
        %1689 = vmatprep.subr.mxu0 0.0
        %1690 = vmatpush1.msra.mxu0 0.0
        %1691 = vmatprep.subr.mxu0 0.0
        %1692 = vmatpush1.msra.mxu0 0.0
        %1693 = vmatprep.subr.mxu0 0.0
        %1694 = vmatpush1.msra.mxu0 0.0
        %1695 = vmatprep.subr.mxu0 0.0
        %1696 = vmatpush1.msra.mxu0 0.0
        %1697 = vmatprep.subr.mxu0 0.0
        %1698 = vmatpush1.msra.mxu0 0.0
        %1699 = vmatprep.subr.mxu0 0.0
        %1700 = vmatpush1.msra.mxu0 0.0
        %1701 = vmatprep.subr.mxu0 0.0
        %1702 = vmatpush1.msra.mxu0 0.0
        %1703 = vmatprep.subr.mxu0 0.0
        %1704 = vmatpush1.msra.mxu0 0.0
        %1705 = vmatprep.subr.mxu0 0.0
        %1706 = vmatpush1.msra.mxu0 0.0
        %1707 = vmatprep.subr.mxu0 0.0
        %1708 = vmatpush1.msra.mxu0 0.0
        %1709 = vmatprep.subr.mxu0 0.0
        %1710 = vmatpush1.msra.mxu0 0.0
        %1711 = vmatprep.subr.mxu0 0.0
        %1712 = vmatpush1.msra.mxu0 0.0
        %1713 = vmatprep.subr.mxu0 0.0
        %1714 = vmatpush1.msra.mxu0 0.0
        %1715 = vmatprep.subr.mxu0 0.0
        %1716 = vmatpush1.msra.mxu0 0.0
        %1717 = vmatprep.subr.mxu0 0.0
        %1718 = vmatpush1.msra.mxu0 0.0
        %1719 = vmatprep.subr.mxu0 0.0
        %1720 = vmatpush1.msra.mxu0 0.0
        %1721 = vmatprep.mubr.f32.mxu0 0.0
        %1722 = vmatmul.mubr.f32.gmra.mrb[0].mxu0 %v1652
        %v1723 = vpop.f32.mrb[0].mxu0
        %v1724 = vadd.f32 %v1649, %v1723
        %v1725 = vpop.f32.mrb[0].mxu0
        %1726 = vdwg.mxu0
        %1727 = vst [vmem:[%s381] sm:$0x1] %v1724
        %s1728 = sand.u32 %s271, 1
        %s1729 = scalar_lea.sflag [#allocation4], %s1728
        %s1730 = sand.u32 %s271, 1
        %s1731 = scalar_lea.vmem [#allocation3], %s1730
        // Predicated region
        $region65: #{tpu_custom_call.1} parent=63 // pred_check
          %p1732 = pneg %p281
        $region66: #{tpu_custom_call.1} parent=63 // pred_check_branch
          %1734 = sbr.rel (%p1732) target = $region68
        $region67: #{tpu_custom_call.1} parent=63 // pred_region
          %s1736 = ssub.s32 16, 16
          %1737 = vsyncadd %s1729, %s1736
          %s1738 = smul.addr %s27, 16
          %s1739 = scalar_lea.hbm %s11, %s1738
          %s1741 = sshll.u32 %s1731, 4
          %s1742 = int_to_ptr.vmem [resolvable:$true] %s1741
          %1744 = dma.vmem_to_hbm [thread:$0]  %s1742, 16, %s1739, %s1729
        $region68: #{tpu_custom_call.1} parent=63 // pred_fallthru
          _
      $region64: #{tpu_custom_call.1} parent=5 // pred_fallthru
        _
      %p1745 = scmp.le.s32.totalorder 2, %s22
      // Predicated region
      $region69: #{tpu_custom_call.1} parent=5 // pred_check
        %p1746 = pneg %p1745
      $region70: #{tpu_custom_call.1} parent=5 // pred_check_branch
        %1748 = sbr.rel (%p1746) target = $region72
      $region71: #{tpu_custom_call.1} parent=5 // pred_region
        %s1749 = ssub.s32 %s22, 2
        // Predicated region
        $region73: #{tpu_custom_call.1} parent=71 // pred_check
          %p1750 = pneg %p287
        $region74: #{tpu_custom_call.1} parent=71 // pred_check_branch
          %1752 = sbr.rel (%p1750) target = $region76
        $region75: #{tpu_custom_call.1} parent=71 // pred_region
          %s1753 = sand.u32 %s272, 1
          %s1754 = scalar_lea.sflag [#allocation4], %s1753
          %s1755 = sand.u32 %s272, 1
          %s1756 = scalar_lea.vmem [#allocation3], %s1755
          %1757 = dma.done %s1754, 16
        $region76: #{tpu_custom_call.1} parent=71 // pred_fallthru
          _
      $region72: #{tpu_custom_call.1} parent=5 // pred_fallthru
        _
    $region6: #{tpu_custom_call.1} parent=1 // loop_footer
      %s26 = sadd.s32 1, %s22
    $region7: #{tpu_custom_call.1} parent=1 // loop_footer_branch
      %21 = sbr.rel target = $region3
    $region8: #{tpu_custom_call.1} parent=1 // loop_exit
      _
    %1758 = vsyncpa [#allocation4], 1
    %s1759 = scalar_lea.sflag [#allocation4], 1
    %1760 = vsyncpa %s1759, 1

</llo_original>
